<compile_context>
chip_gen: v5e
topology: v5e:2x2
jax: 0.10.0
libtpu: 0.0.40
codegen_flags: <defaults>
</compile_context>

<pallas_src>
import functools

import jax
import jax.numpy as jnp
from jax import lax
from jax.experimental import pallas as pl
from jax.experimental.pallas import tpu as pltpu

NUM_CHARS = 27          # ['<EON>'] + 26 lowercase letters
HIDDEN = 128


def lstm_recurrence_kernel(xp_ref, w_hh_t_ref, h_out_ref, h_sc, c_sc):
    """Serial LSTM recurrence over one (time_tile, batch_tile) block.

    xp_ref:     (Tt, Bt, 4H) f32 -- precomputed x_t @ W_ih^T + (b_ih + b_hh)
    w_hh_t_ref: (H, 4H)      f32 -- W_hh^T (pinned, constant index_map)
    h_out_ref:  (Tt, Bt, H)  f32 -- lane-dense hidden-state output
    h_sc/c_sc:  (Bt, H)      f32 -- carry across time tiles (VMEM scratch)
    """
    Tt = xp_ref.shape[0]
    H = h_sc.shape[-1]

    # Zero (h0, c0) at the start of each batch tile's time sweep
    # (PyTorch default when no (h0, c0) is passed to nn.LSTM).
    @pl.when(pl.program_id(1) == 0)
    def _():
        h_sc[...] = jnp.zeros_like(h_sc)
        c_sc[...] = jnp.zeros_like(c_sc)

    w_hh_t = w_hh_t_ref[...]            # hoisted: load recurrent weights once per tile

    def step(t, carry):
        h, c = carry
        # gates = (x_t @ W_ih^T + b) + h @ W_hh^T  -> (Bt, 4H); bias pre-folded.
        gates = xp_ref[t] + jnp.dot(h, w_hh_t, preferred_element_type=jnp.float32)
        # PyTorch gate order: i, f, g, o (all slices 128-lane aligned).
        i = jax.nn.sigmoid(gates[:, 0:H])
        f = jax.nn.sigmoid(gates[:, H:2 * H])
        g = jnp.tanh(gates[:, 2 * H:3 * H])
        o = jax.nn.sigmoid(gates[:, 3 * H:4 * H])
        c_new = f * c + i * g
        h_new = o * jnp.tanh(c_new)
        h_out_ref[t] = h_new.astype(h_out_ref.dtype)   # full 128-wide unmasked store
        return h_new, c_new

    # Fully unrolled serial loop; h/c are carried in vregs within the tile.
    h_fin, c_fin = lax.fori_loop(0, Tt, step, (h_sc[...], c_sc[...]), unroll=True)
    h_sc[...] = h_fin
    c_sc[...] = c_fin


def _round_up(v, m):
    return ((v + m - 1) // m) * m


@functools.partial(jax.jit, static_argnames=("t_tile", "b_tile"))
def name_lstm_forward(x, params, *, t_tile=16, b_tile=256):
    """x: (B, T, NUM_CHARS) f32 -> logits (B, T, NUM_CHARS) f32."""
    B, T, C = x.shape
    H = HIDDEN

    w_ih_t = params["w_ih"].T                               # (C, 4H)
    w_hh_t = params["w_hh"].T                               # (H, 4H)
    bias = params["b_ih"] + params["b_hh"]                  # (4H,)
    w_fc_t = params["w_fc"].T                               # (H, NUM_CHARS)
    b_fc = params["b_fc"]                                   # (NUM_CHARS,)

    # ---- hoisted input projection: one big matmul over all timesteps ----
    x_tm = jnp.transpose(x, (1, 0, 2))                      # (T, B, C) time-major
    x_proj = jnp.einsum("tbc,cg->tbg", x_tm, w_ih_t,
                        preferred_element_type=jnp.float32) + bias   # (T, B, 4H)
    # TODO(synk): for strictly one-hot inputs this could be a row gather of
    # (w_ih_t + bias) by char id instead of a matmul.

    # ---- tiling: time streamed serially, batch tiled (sublane-aligned to 8) ----
    Tt = min(t_tile, T)
    Bt = min(b_tile, _round_up(B, 8))                       # multiple of 8
    Tp = pl.cdiv(T, Tt) * Tt
    Bp = pl.cdiv(B, Bt) * Bt
    if (Tp, Bp) != (T, B):
        # Padding sits at the *end* of time (cannot corrupt earlier real steps) and
        # in independent batch rows; both are sliced off below.
        x_proj = jnp.pad(x_proj, ((0, Tp - T), (0, Bp - B), (0, 0)))
    nb, nt = Bp // Bt, Tp // Tt

    h_all = pl.pallas_call(
        lstm_recurrence_kernel,
        out_shape=jax.ShapeDtypeStruct((Tp, Bp, H), jnp.float32),
        grid_spec=pltpu.PrefetchScalarGridSpec(
            num_scalar_prefetch=0,
            grid=(nb, nt),                                   # time innermost (serial)
            in_specs=[
                pl.BlockSpec((Tt, Bt, 4 * H), lambda b, t: (t, b, 0)),
                pl.BlockSpec((H, 4 * H), lambda b, t: (0, 0)),   # pinned weights
            ],
            out_specs=pl.BlockSpec((Tt, Bt, H), lambda b, t: (t, b, 0)),
            scratch_shapes=[
                pltpu.VMEM((Bt, H), jnp.float32),            # h carry
                pltpu.VMEM((Bt, H), jnp.float32),            # c carry
            ],
        ),
        compiler_params=pltpu.CompilerParams(
            dimension_semantics=("parallel", "arbitrary")),
    )(x_proj, w_hh_t)

    h_all = h_all[:T, :B]                                    # strip padding -> (T, B, H)

    # ---- hoisted fc projection: one big matmul after the recurrence ----
    logits_tm = jnp.einsum("tbh,hc->tbc", h_all, w_fc_t,
                           preferred_element_type=jnp.float32) + b_fc
    return jnp.transpose(logits_tm, (1, 0, 2))               # back to (B, T, NUM_CHARS)


def init_params(key):
    """Deterministic init mirroring nn.LSTM / nn.Linear shapes (uniform(-1/sqrt(H), 1/sqrt(H)))."""
    k = 1.0 / jnp.sqrt(jnp.float32(HIDDEN))
    keys = jax.random.split(key, 6)
    u = lambda kk, shape: jax.random.uniform(kk, shape, jnp.float32, -k, k)
    return {
        "w_ih": u(keys[0], (4 * HIDDEN, NUM_CHARS)),   # weight_ih_l0
        "w_hh": u(keys[1], (4 * HIDDEN, HIDDEN)),      # weight_hh_l0
        "b_ih": u(keys[2], (4 * HIDDEN,)),             # bias_ih_l0
        "b_hh": u(keys[3], (4 * HIDDEN,)),             # bias_hh_l0
        "w_fc": u(keys[4], (NUM_CHARS, HIDDEN)),       # fc.weight
        "b_fc": u(keys[5], (NUM_CHARS,)),              # fc.bias
    }


def reference_forward(x, params):
    """Pure-JAX reference of the PyTorch forward for validation."""
    B, T, _ = x.shape
    H = HIDDEN
    w_ih_t = params["w_ih"].T
    w_hh_t = params["w_hh"].T
    bias = params["b_ih"] + params["b_hh"]

    def step(carry, x_t):
        h, c = carry
        gates = x_t @ w_ih_t + h @ w_hh_t + bias
        i = jax.nn.sigmoid(gates[:, 0:H])
        f = jax.nn.sigmoid(gates[:, H:2 * H])
        g = jnp.tanh(gates[:, 2 * H:3 * H])
        o = jax.nn.sigmoid(gates[:, 3 * H:4 * H])
        c = f * c + i * g
        h = o * jnp.tanh(c)
        return (h, c), h

    h0 = jnp.zeros((B, H), jnp.float32)
    c0 = jnp.zeros((B, H), jnp.float32)
    _, hs = lax.scan(step, (h0, c0), jnp.transpose(x, (1, 0, 2)))
    hs = jnp.transpose(hs, (1, 0, 2))                       # (B, T, H)
    return hs @ params["w_fc"].T + params["b_fc"]


if __name__ == "__main__":
    key = jax.random.PRNGKey(0)
    pkey, xkey1, xkey2 = jax.random.split(key, 3)
    params = init_params(pkey)

    # Small example input: batch=2, seq=8, one-hot characters (as the training
    # code would feed to nn.LSTM with batch_first=True).
    B, T = 2, 8
    char_ids = jax.random.randint(xkey1, (B, T), 0, NUM_CHARS)
    x = jax.nn.one_hot(char_ids, NUM_CHARS, dtype=jnp.float32)   # (B, T, 27)

    out = jax.block_until_ready(name_lstm_forward(x, params))
    ref = jax.block_until_ready(reference_forward(x, params))
    assert out.shape == (B, T, NUM_CHARS)
    assert jnp.allclose(out, ref, atol=1e-3, rtol=1e-3)

    # Second check: odd batch/seq and a small time tile so the carry crosses
    # multiple time tiles (exercises time padding + VMEM-scratch carry path).
    B2, T2 = 3, 11
    ids2 = jax.random.randint(xkey2, (B2, T2), 0, NUM_CHARS)
    x2 = jax.nn.one_hot(ids2, NUM_CHARS, dtype=jnp.float32)
    out2 = jax.block_until_ready(name_lstm_forward(x2, params, t_tile=4))
    ref2 = jax.block_until_ready(reference_forward(x2, params))
    assert out2.shape == (B2, T2, NUM_CHARS)
    assert jnp.allclose(out2, ref2, atol=1e-3, rtol=1e-3)

    print("KERNEL_OK")
</pallas_src>

<mosaic_0001>
module attributes {stable_mosaic.version = 11 : i64} {
  func.func @lstm_recurrence_kernel(%arg0: i32, %arg1: i32, %arg2: memref<8x8x512xf32, #tpu.memory_space<vmem>>, %arg3: memref<128x512xf32, #tpu.memory_space<vmem>>, %arg4: memref<8x8x128xf32, #tpu.memory_space<vmem>>, %arg5: memref<8x128xf32, #tpu.memory_space<vmem>>, %arg6: memref<8x128xf32, #tpu.memory_space<vmem>>) attributes {dimension_semantics = [#tpu.dimension_semantics<parallel>, #tpu.dimension_semantics<arbitrary>], iteration_bounds = array<i64: 1, 1>, scalar_prefetch = 0 : i64, scratch_operands = 2 : i64, tpu.core_type = #tpu.core_type<tc>, window_params = [{transform_indices = @transform_0, window_bounds = array<i64: 8, 8, 512>}, {pipeline_mode = #tpu.pipeline_mode<synchronous>, transform_indices = @transform_1, window_bounds = array<i64: 128, 512>}, {transform_indices = @transform_2, window_bounds = array<i64: 8, 8, 128>}]} {
    %c0_i32 = arith.constant 0 : i32
    %0 = arith.cmpi eq, %arg1, %c0_i32 : i32
    %1 = arith.extui %0 : i1 to i32
    %c0_i32_0 = arith.constant 0 : i32
    %2 = arith.cmpi ne, %1, %c0_i32_0 : i32
    scf.if %2 {
      %cst_74 = arith.constant 0.000000e+00 : f32
      %280 = vector.broadcast %cst_74 : f32 to vector<8x128xf32>
      %c0_75 = arith.constant 0 : index
      %c0_76 = arith.constant 0 : index
      %281 = vector.load %arg5[%c0_75, %c0_76] : memref<8x128xf32, #tpu.memory_space<vmem>>, vector<8x128xf32>
      tpu.vector_store %arg5[%c0_75, %c0_76], %280 {strides = array<i32>} : memref<8x128xf32, #tpu.memory_space<vmem>>, vector<8x128xf32>,
      %cst_77 = arith.constant 0.000000e+00 : f32
      %282 = vector.broadcast %cst_77 : f32 to vector<8x128xf32>
      %c0_78 = arith.constant 0 : index
      %c0_79 = arith.constant 0 : index
      %283 = vector.load %arg6[%c0_78, %c0_79] : memref<8x128xf32, #tpu.memory_space<vmem>>, vector<8x128xf32>
      tpu.vector_store %arg6[%c0_78, %c0_79], %282 {strides = array<i32>} : memref<8x128xf32, #tpu.memory_space<vmem>>, vector<8x128xf32>,
    } else {
    }
    %c0 = arith.constant 0 : index
    %c0_1 = arith.constant 0 : index
    %3 = vector.load %arg3[%c0, %c0_1] : memref<128x512xf32, #tpu.memory_space<vmem>>, vector<128x512xf32>
    %c0_2 = arith.constant 0 : index
    %c0_3 = arith.constant 0 : index
    %4 = vector.load %arg5[%c0_2, %c0_3] : memref<8x128xf32, #tpu.memory_space<vmem>>, vector<8x128xf32>
    %c0_4 = arith.constant 0 : index
    %c0_5 = arith.constant 0 : index
    %5 = vector.load %arg6[%c0_4, %c0_5] : memref<8x128xf32, #tpu.memory_space<vmem>>, vector<8x128xf32>
    %c0_i32_6 = arith.constant 0 : i32
    %6 = arith.index_cast %c0_i32_6 : i32 to index
    %c0_7 = arith.constant 0 : index
    %c0_8 = arith.constant 0 : index
    %7 = vector.load %arg2[%6, %c0_7, %c0_8] : memref<8x8x512xf32, #tpu.memory_space<vmem>>, vector<1x8x512xf32>
    %8 = vector.shape_cast %7 : vector<1x8x512xf32> to vector<8x512xf32>
    %cst = arith.constant dense<0.000000e+00> : vector<8x512xf32>
    %9 = tpu.matmul %4, %3, %cst {dimension_numbers = #tpu.dot_dimension_numbers<[1], [0], [0], [1], [0, 0, 1, 1], [], []>} : vector<8x128xf32>, vector<128x512xf32>, vector<8x512xf32> -> vector<8x512xf32>
    %10 = arith.addf %8, %9 : vector<8x512xf32>
    %11 = vector.extract_strided_slice %10 {offsets = [0, 0], sizes = [8, 128], strides = [1, 1]} : vector<8x512xf32> to vector<8x128xf32>
    %12 = arith.negf %11 : vector<8x128xf32>
    %13 = math.exp %12 : vector<8x128xf32>
    %cst_9 = arith.constant 1.000000e+00 : f32
    %14 = vector.broadcast %cst_9 : f32 to vector<8x128xf32>
    %15 = arith.addf %14, %13 : vector<8x128xf32>
    %16 = arith.divf %14, %15 : vector<8x128xf32>
    %17 = vector.extract_strided_slice %10 {offsets = [0, 128], sizes = [8, 128], strides = [1, 1]} : vector<8x512xf32> to vector<8x128xf32>
    %18 = arith.negf %17 : vector<8x128xf32>
    %19 = math.exp %18 : vector<8x128xf32>
    %cst_10 = arith.constant 1.000000e+00 : f32
    %20 = vector.broadcast %cst_10 : f32 to vector<8x128xf32>
    %21 = arith.addf %20, %19 : vector<8x128xf32>
    %22 = arith.divf %20, %21 : vector<8x128xf32>
    %23 = vector.extract_strided_slice %10 {offsets = [0, 256], sizes = [8, 128], strides = [1, 1]} : vector<8x512xf32> to vector<8x128xf32>
    %24 = math.tanh %23 : vector<8x128xf32>
    %25 = vector.extract_strided_slice %10 {offsets = [0, 384], sizes = [8, 128], strides = [1, 1]} : vector<8x512xf32> to vector<8x128xf32>
    %26 = arith.negf %25 : vector<8x128xf32>
    %27 = math.exp %26 : vector<8x128xf32>
    %cst_11 = arith.constant 1.000000e+00 : f32
    %28 = vector.broadcast %cst_11 : f32 to vector<8x128xf32>
    %29 = arith.addf %28, %27 : vector<8x128xf32>
    %30 = arith.divf %28, %29 : vector<8x128xf32>
    %31 = arith.mulf %22, %5 : vector<8x128xf32>
    %32 = arith.mulf %16, %24 : vector<8x128xf32>
    %33 = arith.addf %31, %32 : vector<8x128xf32>
    %34 = math.tanh %33 : vector<8x128xf32>
    %35 = arith.mulf %30, %34 : vector<8x128xf32>
    %36 = arith.index_cast %c0_i32_6 : i32 to index
    %c0_12 = arith.constant 0 : index
    %c0_13 = arith.constant 0 : index
    %37 = vector.load %arg4[%36, %c0_12, %c0_13] : memref<8x8x128xf32, #tpu.memory_space<vmem>>, vector<1x8x128xf32>
    %38 = vector.shape_cast %37 : vector<1x8x128xf32> to vector<8x128xf32>
    %39 = vector.shape_cast %35 : vector<8x128xf32> to vector<1x8x128xf32>
    tpu.vector_store %arg4[%36, %c0_12, %c0_13], %39 {strides = array<i32>} : memref<8x8x128xf32, #tpu.memory_space<vmem>>, vector<1x8x128xf32>,
    %c1_i32 = arith.constant 1 : i32
    %40 = arith.index_cast %c1_i32 : i32 to index
    %c0_14 = arith.constant 0 : index
    %c0_15 = arith.constant 0 : index
    %41 = vector.load %arg2[%40, %c0_14, %c0_15] : memref<8x8x512xf32, #tpu.memory_space<vmem>>, vector<1x8x512xf32>
    %42 = vector.shape_cast %41 : vector<1x8x512xf32> to vector<8x512xf32>
    %cst_16 = arith.constant dense<0.000000e+00> : vector<8x512xf32>
    %43 = tpu.matmul %35, %3, %cst_16 {dimension_numbers = #tpu.dot_dimension_numbers<[1], [0], [0], [1], [0, 0, 1, 1], [], []>} : vector<8x128xf32>, vector<128x512xf32>, vector<8x512xf32> -> vector<8x512xf32>
    %44 = arith.addf %42, %43 : vector<8x512xf32>
    %45 = vector.extract_strided_slice %44 {offsets = [0, 0], sizes = [8, 128], strides = [1, 1]} : vector<8x512xf32> to vector<8x128xf32>
    %46 = arith.negf %45 : vector<8x128xf32>
    %47 = math.exp %46 : vector<8x128xf32>
    %cst_17 = arith.constant 1.000000e+00 : f32
    %48 = vector.broadcast %cst_17 : f32 to vector<8x128xf32>
    %49 = arith.addf %48, %47 : vector<8x128xf32>
    %50 = arith.divf %48, %49 : vector<8x128xf32>
    %51 = vector.extract_strided_slice %44 {offsets = [0, 128], sizes = [8, 128], strides = [1, 1]} : vector<8x512xf32> to vector<8x128xf32>
    %52 = arith.negf %51 : vector<8x128xf32>
    %53 = math.exp %52 : vector<8x128xf32>
    %cst_18 = arith.constant 1.000000e+00 : f32
    %54 = vector.broadcast %cst_18 : f32 to vector<8x128xf32>
    %55 = arith.addf %54, %53 : vector<8x128xf32>
    %56 = arith.divf %54, %55 : vector<8x128xf32>
    %57 = vector.extract_strided_slice %44 {offsets = [0, 256], sizes = [8, 128], strides = [1, 1]} : vector<8x512xf32> to vector<8x128xf32>
    %58 = math.tanh %57 : vector<8x128xf32>
    %59 = vector.extract_strided_slice %44 {offsets = [0, 384], sizes = [8, 128], strides = [1, 1]} : vector<8x512xf32> to vector<8x128xf32>
    %60 = arith.negf %59 : vector<8x128xf32>
    %61 = math.exp %60 : vector<8x128xf32>
    %cst_19 = arith.constant 1.000000e+00 : f32
    %62 = vector.broadcast %cst_19 : f32 to vector<8x128xf32>
    %63 = arith.addf %62, %61 : vector<8x128xf32>
    %64 = arith.divf %62, %63 : vector<8x128xf32>
    %65 = arith.mulf %56, %33 : vector<8x128xf32>
    %66 = arith.mulf %50, %58 : vector<8x128xf32>
    %67 = arith.addf %65, %66 : vector<8x128xf32>
    %68 = math.tanh %67 : vector<8x128xf32>
    %69 = arith.mulf %64, %68 : vector<8x128xf32>
    %70 = arith.index_cast %c1_i32 : i32 to index
    %c0_20 = arith.constant 0 : index
    %c0_21 = arith.constant 0 : index
    %71 = vector.load %arg4[%70, %c0_20, %c0_21] : memref<8x8x128xf32, #tpu.memory_space<vmem>>, vector<1x8x128xf32>
    %72 = vector.shape_cast %71 : vector<1x8x128xf32> to vector<8x128xf32>
    %73 = vector.shape_cast %69 : vector<8x128xf32> to vector<1x8x128xf32>
    tpu.vector_store %arg4[%70, %c0_20, %c0_21], %73 {strides = array<i32>} : memref<8x8x128xf32, #tpu.memory_space<vmem>>, vector<1x8x128xf32>,
    %c2_i32 = arith.constant 2 : i32
    %74 = arith.index_cast %c2_i32 : i32 to index
    %c0_22 = arith.constant 0 : index
    %c0_23 = arith.constant 0 : index
    %75 = vector.load %arg2[%74, %c0_22, %c0_23] : memref<8x8x512xf32, #tpu.memory_space<vmem>>, vector<1x8x512xf32>
    %76 = vector.shape_cast %75 : vector<1x8x512xf32> to vector<8x512xf32>
    %cst_24 = arith.constant dense<0.000000e+00> : vector<8x512xf32>
    %77 = tpu.matmul %69, %3, %cst_24 {dimension_numbers = #tpu.dot_dimension_numbers<[1], [0], [0], [1], [0, 0, 1, 1], [], []>} : vector<8x128xf32>, vector<128x512xf32>, vector<8x512xf32> -> vector<8x512xf32>
    %78 = arith.addf %76, %77 : vector<8x512xf32>
    %79 = vector.extract_strided_slice %78 {offsets = [0, 0], sizes = [8, 128], strides = [1, 1]} : vector<8x512xf32> to vector<8x128xf32>
    %80 = arith.negf %79 : vector<8x128xf32>
    %81 = math.exp %80 : vector<8x128xf32>
    %cst_25 = arith.constant 1.000000e+00 : f32
    %82 = vector.broadcast %cst_25 : f32 to vector<8x128xf32>
    %83 = arith.addf %82, %81 : vector<8x128xf32>
    %84 = arith.divf %82, %83 : vector<8x128xf32>
    %85 = vector.extract_strided_slice %78 {offsets = [0, 128], sizes = [8, 128], strides = [1, 1]} : vector<8x512xf32> to vector<8x128xf32>
    %86 = arith.negf %85 : vector<8x128xf32>
    %87 = math.exp %86 : vector<8x128xf32>
    %cst_26 = arith.constant 1.000000e+00 : f32
    %88 = vector.broadcast %cst_26 : f32 to vector<8x128xf32>
    %89 = arith.addf %88, %87 : vector<8x128xf32>
    %90 = arith.divf %88, %89 : vector<8x128xf32>
    %91 = vector.extract_strided_slice %78 {offsets = [0, 256], sizes = [8, 128], strides = [1, 1]} : vector<8x512xf32> to vector<8x128xf32>
    %92 = math.tanh %91 : vector<8x128xf32>
    %93 = vector.extract_strided_slice %78 {offsets = [0, 384], sizes = [8, 128], strides = [1, 1]} : vector<8x512xf32> to vector<8x128xf32>
    %94 = arith.negf %93 : vector<8x128xf32>
    %95 = math.exp %94 : vector<8x128xf32>
    %cst_27 = arith.constant 1.000000e+00 : f32
    %96 = vector.broadcast %cst_27 : f32 to vector<8x128xf32>
    %97 = arith.addf %96, %95 : vector<8x128xf32>
    %98 = arith.divf %96, %97 : vector<8x128xf32>
    %99 = arith.mulf %90, %67 : vector<8x128xf32>
    %100 = arith.mulf %84, %92 : vector<8x128xf32>
    %101 = arith.addf %99, %100 : vector<8x128xf32>
    %102 = math.tanh %101 : vector<8x128xf32>
    %103 = arith.mulf %98, %102 : vector<8x128xf32>
    %104 = arith.index_cast %c2_i32 : i32 to index
    %c0_28 = arith.constant 0 : index
    %c0_29 = arith.constant 0 : index
    %105 = vector.load %arg4[%104, %c0_28, %c0_29] : memref<8x8x128xf32, #tpu.memory_space<vmem>>, vector<1x8x128xf32>
    %106 = vector.shape_cast %105 : vector<1x8x128xf32> to vector<8x128xf32>
    %107 = vector.shape_cast %103 : vector<8x128xf32> to vector<1x8x128xf32>
    tpu.vector_store %arg4[%104, %c0_28, %c0_29], %107 {strides = array<i32>} : memref<8x8x128xf32, #tpu.memory_space<vmem>>, vector<1x8x128xf32>,
    %c3_i32 = arith.constant 3 : i32
    %108 = arith.index_cast %c3_i32 : i32 to index
    %c0_30 = arith.constant 0 : index
    %c0_31 = arith.constant 0 : index
    %109 = vector.load %arg2[%108, %c0_30, %c0_31] : memref<8x8x512xf32, #tpu.memory_space<vmem>>, vector<1x8x512xf32>
    %110 = vector.shape_cast %109 : vector<1x8x512xf32> to vector<8x512xf32>
    %cst_32 = arith.constant dense<0.000000e+00> : vector<8x512xf32>
    %111 = tpu.matmul %103, %3, %cst_32 {dimension_numbers = #tpu.dot_dimension_numbers<[1], [0], [0], [1], [0, 0, 1, 1], [], []>} : vector<8x128xf32>, vector<128x512xf32>, vector<8x512xf32> -> vector<8x512xf32>
    %112 = arith.addf %110, %111 : vector<8x512xf32>
    %113 = vector.extract_strided_slice %112 {offsets = [0, 0], sizes = [8, 128], strides = [1, 1]} : vector<8x512xf32> to vector<8x128xf32>
    %114 = arith.negf %113 : vector<8x128xf32>
    %115 = math.exp %114 : vector<8x128xf32>
    %cst_33 = arith.constant 1.000000e+00 : f32
    %116 = vector.broadcast %cst_33 : f32 to vector<8x128xf32>
    %117 = arith.addf %116, %115 : vector<8x128xf32>
    %118 = arith.divf %116, %117 : vector<8x128xf32>
    %119 = vector.extract_strided_slice %112 {offsets = [0, 128], sizes = [8, 128], strides = [1, 1]} : vector<8x512xf32> to vector<8x128xf32>
    %120 = arith.negf %119 : vector<8x128xf32>
    %121 = math.exp %120 : vector<8x128xf32>
    %cst_34 = arith.constant 1.000000e+00 : f32
    %122 = vector.broadcast %cst_34 : f32 to vector<8x128xf32>
    %123 = arith.addf %122, %121 : vector<8x128xf32>
    %124 = arith.divf %122, %123 : vector<8x128xf32>
    %125 = vector.extract_strided_slice %112 {offsets = [0, 256], sizes = [8, 128], strides = [1, 1]} : vector<8x512xf32> to vector<8x128xf32>
    %126 = math.tanh %125 : vector<8x128xf32>
    %127 = vector.extract_strided_slice %112 {offsets = [0, 384], sizes = [8, 128], strides = [1, 1]} : vector<8x512xf32> to vector<8x128xf32>
    %128 = arith.negf %127 : vector<8x128xf32>
    %129 = math.exp %128 : vector<8x128xf32>
    %cst_35 = arith.constant 1.000000e+00 : f32
    %130 = vector.broadcast %cst_35 : f32 to vector<8x128xf32>
    %131 = arith.addf %130, %129 : vector<8x128xf32>
    %132 = arith.divf %130, %131 : vector<8x128xf32>
    %133 = arith.mulf %124, %101 : vector<8x128xf32>
    %134 = arith.mulf %118, %126 : vector<8x128xf32>
    %135 = arith.addf %133, %134 : vector<8x128xf32>
    %136 = math.tanh %135 : vector<8x128xf32>
    %137 = arith.mulf %132, %136 : vector<8x128xf32>
    %138 = arith.index_cast %c3_i32 : i32 to index
    %c0_36 = arith.constant 0 : index
    %c0_37 = arith.constant 0 : index
    %139 = vector.load %arg4[%138, %c0_36, %c0_37] : memref<8x8x128xf32, #tpu.memory_space<vmem>>, vector<1x8x128xf32>
    %140 = vector.shape_cast %139 : vector<1x8x128xf32> to vector<8x128xf32>
    %141 = vector.shape_cast %137 : vector<8x128xf32> to vector<1x8x128xf32>
    tpu.vector_store %arg4[%138, %c0_36, %c0_37], %141 {strides = array<i32>} : memref<8x8x128xf32, #tpu.memory_space<vmem>>, vector<1x8x128xf32>,
    %c4_i32 = arith.constant 4 : i32
    %142 = arith.index_cast %c4_i32 : i32 to index
    %c0_38 = arith.constant 0 : index
    %c0_39 = arith.constant 0 : index
    %143 = vector.load %arg2[%142, %c0_38, %c0_39] : memref<8x8x512xf32, #tpu.memory_space<vmem>>, vector<1x8x512xf32>
    %144 = vector.shape_cast %143 : vector<1x8x512xf32> to vector<8x512xf32>
    %cst_40 = arith.constant dense<0.000000e+00> : vector<8x512xf32>
    %145 = tpu.matmul %137, %3, %cst_40 {dimension_numbers = #tpu.dot_dimension_numbers<[1], [0], [0], [1], [0, 0, 1, 1], [], []>} : vector<8x128xf32>, vector<128x512xf32>, vector<8x512xf32> -> vector<8x512xf32>
    %146 = arith.addf %144, %145 : vector<8x512xf32>
    %147 = vector.extract_strided_slice %146 {offsets = [0, 0], sizes = [8, 128], strides = [1, 1]} : vector<8x512xf32> to vector<8x128xf32>
    %148 = arith.negf %147 : vector<8x128xf32>
    %149 = math.exp %148 : vector<8x128xf32>
    %cst_41 = arith.constant 1.000000e+00 : f32
    %150 = vector.broadcast %cst_41 : f32 to vector<8x128xf32>
    %151 = arith.addf %150, %149 : vector<8x128xf32>
    %152 = arith.divf %150, %151 : vector<8x128xf32>
    %153 = vector.extract_strided_slice %146 {offsets = [0, 128], sizes = [8, 128], strides = [1, 1]} : vector<8x512xf32> to vector<8x128xf32>
    %154 = arith.negf %153 : vector<8x128xf32>
    %155 = math.exp %154 : vector<8x128xf32>
    %cst_42 = arith.constant 1.000000e+00 : f32
    %156 = vector.broadcast %cst_42 : f32 to vector<8x128xf32>
    %157 = arith.addf %156, %155 : vector<8x128xf32>
    %158 = arith.divf %156, %157 : vector<8x128xf32>
    %159 = vector.extract_strided_slice %146 {offsets = [0, 256], sizes = [8, 128], strides = [1, 1]} : vector<8x512xf32> to vector<8x128xf32>
    %160 = math.tanh %159 : vector<8x128xf32>
    %161 = vector.extract_strided_slice %146 {offsets = [0, 384], sizes = [8, 128], strides = [1, 1]} : vector<8x512xf32> to vector<8x128xf32>
    %162 = arith.negf %161 : vector<8x128xf32>
    %163 = math.exp %162 : vector<8x128xf32>
    %cst_43 = arith.constant 1.000000e+00 : f32
    %164 = vector.broadcast %cst_43 : f32 to vector<8x128xf32>
    %165 = arith.addf %164, %163 : vector<8x128xf32>
    %166 = arith.divf %164, %165 : vector<8x128xf32>
    %167 = arith.mulf %158, %135 : vector<8x128xf32>
    %168 = arith.mulf %152, %160 : vector<8x128xf32>
    %169 = arith.addf %167, %168 : vector<8x128xf32>
    %170 = math.tanh %169 : vector<8x128xf32>
    %171 = arith.mulf %166, %170 : vector<8x128xf32>
    %172 = arith.index_cast %c4_i32 : i32 to index
    %c0_44 = arith.constant 0 : index
    %c0_45 = arith.constant 0 : index
    %173 = vector.load %arg4[%172, %c0_44, %c0_45] : memref<8x8x128xf32, #tpu.memory_space<vmem>>, vector<1x8x128xf32>
    %174 = vector.shape_cast %173 : vector<1x8x128xf32> to vector<8x128xf32>
    %175 = vector.shape_cast %171 : vector<8x128xf32> to vector<1x8x128xf32>
    tpu.vector_store %arg4[%172, %c0_44, %c0_45], %175 {strides = array<i32>} : memref<8x8x128xf32, #tpu.memory_space<vmem>>, vector<1x8x128xf32>,
    %c5_i32 = arith.constant 5 : i32
    %176 = arith.index_cast %c5_i32 : i32 to index
    %c0_46 = arith.constant 0 : index
    %c0_47 = arith.constant 0 : index
    %177 = vector.load %arg2[%176, %c0_46, %c0_47] : memref<8x8x512xf32, #tpu.memory_space<vmem>>, vector<1x8x512xf32>
    %178 = vector.shape_cast %177 : vector<1x8x512xf32> to vector<8x512xf32>
    %cst_48 = arith.constant dense<0.000000e+00> : vector<8x512xf32>
    %179 = tpu.matmul %171, %3, %cst_48 {dimension_numbers = #tpu.dot_dimension_numbers<[1], [0], [0], [1], [0, 0, 1, 1], [], []>} : vector<8x128xf32>, vector<128x512xf32>, vector<8x512xf32> -> vector<8x512xf32>
    %180 = arith.addf %178, %179 : vector<8x512xf32>
    %181 = vector.extract_strided_slice %180 {offsets = [0, 0], sizes = [8, 128], strides = [1, 1]} : vector<8x512xf32> to vector<8x128xf32>
    %182 = arith.negf %181 : vector<8x128xf32>
    %183 = math.exp %182 : vector<8x128xf32>
    %cst_49 = arith.constant 1.000000e+00 : f32
    %184 = vector.broadcast %cst_49 : f32 to vector<8x128xf32>
    %185 = arith.addf %184, %183 : vector<8x128xf32>
    %186 = arith.divf %184, %185 : vector<8x128xf32>
    %187 = vector.extract_strided_slice %180 {offsets = [0, 128], sizes = [8, 128], strides = [1, 1]} : vector<8x512xf32> to vector<8x128xf32>
    %188 = arith.negf %187 : vector<8x128xf32>
    %189 = math.exp %188 : vector<8x128xf32>
    %cst_50 = arith.constant 1.000000e+00 : f32
    %190 = vector.broadcast %cst_50 : f32 to vector<8x128xf32>
    %191 = arith.addf %190, %189 : vector<8x128xf32>
    %192 = arith.divf %190, %191 : vector<8x128xf32>
    %193 = vector.extract_strided_slice %180 {offsets = [0, 256], sizes = [8, 128], strides = [1, 1]} : vector<8x512xf32> to vector<8x128xf32>
    %194 = math.tanh %193 : vector<8x128xf32>
    %195 = vector.extract_strided_slice %180 {offsets = [0, 384], sizes = [8, 128], strides = [1, 1]} : vector<8x512xf32> to vector<8x128xf32>
    %196 = arith.negf %195 : vector<8x128xf32>
    %197 = math.exp %196 : vector<8x128xf32>
    %cst_51 = arith.constant 1.000000e+00 : f32
    %198 = vector.broadcast %cst_51 : f32 to vector<8x128xf32>
    %199 = arith.addf %198, %197 : vector<8x128xf32>
    %200 = arith.divf %198, %199 : vector<8x128xf32>
    %201 = arith.mulf %192, %169 : vector<8x128xf32>
    %202 = arith.mulf %186, %194 : vector<8x128xf32>
    %203 = arith.addf %201, %202 : vector<8x128xf32>
    %204 = math.tanh %203 : vector<8x128xf32>
    %205 = arith.mulf %200, %204 : vector<8x128xf32>
    %206 = arith.index_cast %c5_i32 : i32 to index
    %c0_52 = arith.constant 0 : index
    %c0_53 = arith.constant 0 : index
    %207 = vector.load %arg4[%206, %c0_52, %c0_53] : memref<8x8x128xf32, #tpu.memory_space<vmem>>, vector<1x8x128xf32>
    %208 = vector.shape_cast %207 : vector<1x8x128xf32> to vector<8x128xf32>
    %209 = vector.shape_cast %205 : vector<8x128xf32> to vector<1x8x128xf32>
    tpu.vector_store %arg4[%206, %c0_52, %c0_53], %209 {strides = array<i32>} : memref<8x8x128xf32, #tpu.memory_space<vmem>>, vector<1x8x128xf32>,
    %c6_i32 = arith.constant 6 : i32
    %210 = arith.index_cast %c6_i32 : i32 to index
    %c0_54 = arith.constant 0 : index
    %c0_55 = arith.constant 0 : index
    %211 = vector.load %arg2[%210, %c0_54, %c0_55] : memref<8x8x512xf32, #tpu.memory_space<vmem>>, vector<1x8x512xf32>
    %212 = vector.shape_cast %211 : vector<1x8x512xf32> to vector<8x512xf32>
    %cst_56 = arith.constant dense<0.000000e+00> : vector<8x512xf32>
    %213 = tpu.matmul %205, %3, %cst_56 {dimension_numbers = #tpu.dot_dimension_numbers<[1], [0], [0], [1], [0, 0, 1, 1], [], []>} : vector<8x128xf32>, vector<128x512xf32>, vector<8x512xf32> -> vector<8x512xf32>
    %214 = arith.addf %212, %213 : vector<8x512xf32>
    %215 = vector.extract_strided_slice %214 {offsets = [0, 0], sizes = [8, 128], strides = [1, 1]} : vector<8x512xf32> to vector<8x128xf32>
    %216 = arith.negf %215 : vector<8x128xf32>
    %217 = math.exp %216 : vector<8x128xf32>
    %cst_57 = arith.constant 1.000000e+00 : f32
    %218 = vector.broadcast %cst_57 : f32 to vector<8x128xf32>
    %219 = arith.addf %218, %217 : vector<8x128xf32>
    %220 = arith.divf %218, %219 : vector<8x128xf32>
    %221 = vector.extract_strided_slice %214 {offsets = [0, 128], sizes = [8, 128], strides = [1, 1]} : vector<8x512xf32> to vector<8x128xf32>
    %222 = arith.negf %221 : vector<8x128xf32>
    %223 = math.exp %222 : vector<8x128xf32>
    %cst_58 = arith.constant 1.000000e+00 : f32
    %224 = vector.broadcast %cst_58 : f32 to vector<8x128xf32>
    %225 = arith.addf %224, %223 : vector<8x128xf32>
    %226 = arith.divf %224, %225 : vector<8x128xf32>
    %227 = vector.extract_strided_slice %214 {offsets = [0, 256], sizes = [8, 128], strides = [1, 1]} : vector<8x512xf32> to vector<8x128xf32>
    %228 = math.tanh %227 : vector<8x128xf32>
    %229 = vector.extract_strided_slice %214 {offsets = [0, 384], sizes = [8, 128], strides = [1, 1]} : vector<8x512xf32> to vector<8x128xf32>
    %230 = arith.negf %229 : vector<8x128xf32>
    %231 = math.exp %230 : vector<8x128xf32>
    %cst_59 = arith.constant 1.000000e+00 : f32
    %232 = vector.broadcast %cst_59 : f32 to vector<8x128xf32>
    %233 = arith.addf %232, %231 : vector<8x128xf32>
    %234 = arith.divf %232, %233 : vector<8x128xf32>
    %235 = arith.mulf %226, %203 : vector<8x128xf32>
    %236 = arith.mulf %220, %228 : vector<8x128xf32>
    %237 = arith.addf %235, %236 : vector<8x128xf32>
    %238 = math.tanh %237 : vector<8x128xf32>
    %239 = arith.mulf %234, %238 : vector<8x128xf32>
    %240 = arith.index_cast %c6_i32 : i32 to index
    %c0_60 = arith.constant 0 : index
    %c0_61 = arith.constant 0 : index
    %241 = vector.load %arg4[%240, %c0_60, %c0_61] : memref<8x8x128xf32, #tpu.memory_space<vmem>>, vector<1x8x128xf32>
    %242 = vector.shape_cast %241 : vector<1x8x128xf32> to vector<8x128xf32>
    %243 = vector.shape_cast %239 : vector<8x128xf32> to vector<1x8x128xf32>
    tpu.vector_store %arg4[%240, %c0_60, %c0_61], %243 {strides = array<i32>} : memref<8x8x128xf32, #tpu.memory_space<vmem>>, vector<1x8x128xf32>,
    %c7_i32 = arith.constant 7 : i32
    %244 = arith.index_cast %c7_i32 : i32 to index
    %c0_62 = arith.constant 0 : index
    %c0_63 = arith.constant 0 : index
    %245 = vector.load %arg2[%244, %c0_62, %c0_63] : memref<8x8x512xf32, #tpu.memory_space<vmem>>, vector<1x8x512xf32>
    %246 = vector.shape_cast %245 : vector<1x8x512xf32> to vector<8x512xf32>
    %cst_64 = arith.constant dense<0.000000e+00> : vector<8x512xf32>
    %247 = tpu.matmul %239, %3, %cst_64 {dimension_numbers = #tpu.dot_dimension_numbers<[1], [0], [0], [1], [0, 0, 1, 1], [], []>} : vector<8x128xf32>, vector<128x512xf32>, vector<8x512xf32> -> vector<8x512xf32>
    %248 = arith.addf %246, %247 : vector<8x512xf32>
    %249 = vector.extract_strided_slice %248 {offsets = [0, 0], sizes = [8, 128], strides = [1, 1]} : vector<8x512xf32> to vector<8x128xf32>
    %250 = arith.negf %249 : vector<8x128xf32>
    %251 = math.exp %250 : vector<8x128xf32>
    %cst_65 = arith.constant 1.000000e+00 : f32
    %252 = vector.broadcast %cst_65 : f32 to vector<8x128xf32>
    %253 = arith.addf %252, %251 : vector<8x128xf32>
    %254 = arith.divf %252, %253 : vector<8x128xf32>
    %255 = vector.extract_strided_slice %248 {offsets = [0, 128], sizes = [8, 128], strides = [1, 1]} : vector<8x512xf32> to vector<8x128xf32>
    %256 = arith.negf %255 : vector<8x128xf32>
    %257 = math.exp %256 : vector<8x128xf32>
    %cst_66 = arith.constant 1.000000e+00 : f32
    %258 = vector.broadcast %cst_66 : f32 to vector<8x128xf32>
    %259 = arith.addf %258, %257 : vector<8x128xf32>
    %260 = arith.divf %258, %259 : vector<8x128xf32>
    %261 = vector.extract_strided_slice %248 {offsets = [0, 256], sizes = [8, 128], strides = [1, 1]} : vector<8x512xf32> to vector<8x128xf32>
    %262 = math.tanh %261 : vector<8x128xf32>
    %263 = vector.extract_strided_slice %248 {offsets = [0, 384], sizes = [8, 128], strides = [1, 1]} : vector<8x512xf32> to vector<8x128xf32>
    %264 = arith.negf %263 : vector<8x128xf32>
    %265 = math.exp %264 : vector<8x128xf32>
    %cst_67 = arith.constant 1.000000e+00 : f32
    %266 = vector.broadcast %cst_67 : f32 to vector<8x128xf32>
    %267 = arith.addf %266, %265 : vector<8x128xf32>
    %268 = arith.divf %266, %267 : vector<8x128xf32>
    %269 = arith.mulf %260, %237 : vector<8x128xf32>
    %270 = arith.mulf %254, %262 : vector<8x128xf32>
    %271 = arith.addf %269, %270 : vector<8x128xf32>
    %272 = math.tanh %271 : vector<8x128xf32>
    %273 = arith.mulf %268, %272 : vector<8x128xf32>
    %274 = arith.index_cast %c7_i32 : i32 to index
    %c0_68 = arith.constant 0 : index
    %c0_69 = arith.constant 0 : index
    %275 = vector.load %arg4[%274, %c0_68, %c0_69] : memref<8x8x128xf32, #tpu.memory_space<vmem>>, vector<1x8x128xf32>
    %276 = vector.shape_cast %275 : vector<1x8x128xf32> to vector<8x128xf32>
    %277 = vector.shape_cast %273 : vector<8x128xf32> to vector<1x8x128xf32>
    tpu.vector_store %arg4[%274, %c0_68, %c0_69], %277 {strides = array<i32>} : memref<8x8x128xf32, #tpu.memory_space<vmem>>, vector<1x8x128xf32>,
    %c8_i32 = arith.constant 8 : i32
    %c0_70 = arith.constant 0 : index
    %c0_71 = arith.constant 0 : index
    %278 = vector.load %arg5[%c0_70, %c0_71] : memref<8x128xf32, #tpu.memory_space<vmem>>, vector<8x128xf32>
    tpu.vector_store %arg5[%c0_70, %c0_71], %273 {strides = array<i32>} : memref<8x128xf32, #tpu.memory_space<vmem>>, vector<8x128xf32>,
    %c0_72 = arith.constant 0 : index
    %c0_73 = arith.constant 0 : index
    %279 = vector.load %arg6[%c0_72, %c0_73] : memref<8x128xf32, #tpu.memory_space<vmem>>, vector<8x128xf32>
    tpu.vector_store %arg6[%c0_72, %c0_73], %271 {strides = array<i32>} : memref<8x128xf32, #tpu.memory_space<vmem>>, vector<8x128xf32>,
    return
  }
  func.func @transform_0(%arg0: i32, %arg1: i32) -> (i32, i32, i32) {
    %c0_i32 = arith.constant 0 : i32
    %c0_i32_0 = arith.constant 0 : i32
    return %arg1, %arg0, %c0_i32 : i32, i32, i32
  }
  func.func @transform_1(%arg0: i32, %arg1: i32) -> (i32, i32) {
    %c0_i32 = arith.constant 0 : i32
    %c0_i32_0 = arith.constant 0 : i32
    %c0_i32_1 = arith.constant 0 : i32
    return %c0_i32, %c0_i32_0 : i32, i32
  }
  func.func @transform_2(%arg0: i32, %arg1: i32) -> (i32, i32, i32) {
    %c0_i32 = arith.constant 0 : i32
    %c0_i32_0 = arith.constant 0 : i32
    return %arg1, %arg0, %c0_i32 : i32, i32, i32
  }
}

</mosaic_0001>

<llo_original>
// kernel: name_lstm_forward.1
$region0: #{name_lstm_forward.1}
  #allocation0 [shape = 'u32[]', space=smem, size = 0x4, offset = 0x4, fixed_abs, tag = 'smem constant byte address 0x4 - core index']
  #allocation1 [shape = 'u32[72,128]{1,0:T(1,128)}', space=vmem, size = 0x9000, scoped, tag = 'internal scratch']
  #allocation2 [shape = 'f32[8,128]{1,0:T(8,128)}', space=vmem, size = 0x1000, scoped, tag = 'scratch operand']
  #allocation3 [shape = 'f32[8,128]{1,0:T(8,128)}', space=vmem, size = 0x1000, scoped, tag = 'scratch operand']
  %s0 = inlined_call_operand.vmem [shape: f32[8,8,512], index: 0, kind: input, shape index: {}]
  %s1 = inlined_call_operand.vmem [shape: f32[128,512], index: 1, kind: input, shape index: {}]
  %s2 = inlined_call_operand.vmem [shape: f32[8,8,128], index: 2, kind: output, shape index: {}]
  %s3 = sld [smem:[#allocation0]]
  $region22: #{name_lstm_forward.1} parent=0
    _
  %s5 = ssub.s32 1, %s3
  %s6 = scalar_select 0, %s5, %s3
  // Predicated region
  $region2: #{name_lstm_forward.1} parent=0 // pred_check
    _
  $region3: #{name_lstm_forward.1} parent=0 // pred_check_branch
    %8 = sbr.rel (0) target = $region5
  $region4: #{name_lstm_forward.1} parent=0 // pred_region
    _
  $region5: #{name_lstm_forward.1} parent=0 // pred_fallthru
    _
  // Predicated region
  $region6: #{name_lstm_forward.1} parent=0 // pred_check
    _
  $region7: #{name_lstm_forward.1} parent=0 // pred_check_branch
    %10 = sbr.rel (0) target = $region9
  $region8: #{name_lstm_forward.1} parent=0 // pred_region
    _
  $region9: #{name_lstm_forward.1} parent=0 // pred_fallthru
    _
  %p11 = scmp.eq.s32.totalorder 0, 0
  // Predicated region
  $region10: #{name_lstm_forward.1} parent=0 // pred_check
    %p12 = pneg %p11
  $region11: #{name_lstm_forward.1} parent=0 // pred_check_branch
    %14 = sbr.rel (%p12) target = $region13
  $region12: #{name_lstm_forward.1} parent=0 // pred_region
    %15 = vst [vmem:[#allocation2] sm:$0xff] 0.0
    %16 = vst [vmem:[#allocation3] sm:$0xff] 0.0
  $region13: #{name_lstm_forward.1} parent=0 // pred_fallthru
    _
  %v17 = vld [vmem:[%s1] sm:$0xff]
  %v18 = vld [vmem:[%s1 + $0x8] sm:$0xff]
  %v19 = vld [vmem:[%s1 + $0x10] sm:$0xff]
  %v20 = vld [vmem:[%s1 + $0x18] sm:$0xff]
  %v21 = vld [vmem:[%s1 + $0x20] sm:$0xff]
  %v22 = vld [vmem:[%s1 + $0x28] sm:$0xff]
  %v23 = vld [vmem:[%s1 + $0x30] sm:$0xff]
  %v24 = vld [vmem:[%s1 + $0x38] sm:$0xff]
  %v25 = vld [vmem:[%s1 + $0x40] sm:$0xff]
  %v26 = vld [vmem:[%s1 + $0x48] sm:$0xff]
  %v27 = vld [vmem:[%s1 + $0x50] sm:$0xff]
  %v28 = vld [vmem:[%s1 + $0x58] sm:$0xff]
  %v29 = vld [vmem:[%s1 + $0x60] sm:$0xff]
  %v30 = vld [vmem:[%s1 + $0x68] sm:$0xff]
  %v31 = vld [vmem:[%s1 + $0x70] sm:$0xff]
  %v32 = vld [vmem:[%s1 + $0x78] sm:$0xff]
  %v33 = vld [vmem:[%s1 + $0x80] sm:$0xff]
  %v34 = vld [vmem:[%s1 + $0x88] sm:$0xff]
  %v35 = vld [vmem:[%s1 + $0x90] sm:$0xff]
  %v36 = vld [vmem:[%s1 + $0x98] sm:$0xff]
  %v37 = vld [vmem:[%s1 + $0xa0] sm:$0xff]
  %v38 = vld [vmem:[%s1 + $0xa8] sm:$0xff]
  %v39 = vld [vmem:[%s1 + $0xb0] sm:$0xff]
  %v40 = vld [vmem:[%s1 + $0xb8] sm:$0xff]
  %v41 = vld [vmem:[%s1 + $0xc0] sm:$0xff]
  %v42 = vld [vmem:[%s1 + $0xc8] sm:$0xff]
  %v43 = vld [vmem:[%s1 + $0xd0] sm:$0xff]
  %v44 = vld [vmem:[%s1 + $0xd8] sm:$0xff]
  %v45 = vld [vmem:[%s1 + $0xe0] sm:$0xff]
  %v46 = vld [vmem:[%s1 + $0xe8] sm:$0xff]
  %v47 = vld [vmem:[%s1 + $0xf0] sm:$0xff]
  %v48 = vld [vmem:[%s1 + $0xf8] sm:$0xff]
  %v49 = vld [vmem:[%s1 + $0x100] sm:$0xff]
  %v50 = vld [vmem:[%s1 + $0x108] sm:$0xff]
  %v51 = vld [vmem:[%s1 + $0x110] sm:$0xff]
  %v52 = vld [vmem:[%s1 + $0x118] sm:$0xff]
  %v53 = vld [vmem:[%s1 + $0x120] sm:$0xff]
  %v54 = vld [vmem:[%s1 + $0x128] sm:$0xff]
  %v55 = vld [vmem:[%s1 + $0x130] sm:$0xff]
  %v56 = vld [vmem:[%s1 + $0x138] sm:$0xff]
  %v57 = vld [vmem:[%s1 + $0x140] sm:$0xff]
  %v58 = vld [vmem:[%s1 + $0x148] sm:$0xff]
  %v59 = vld [vmem:[%s1 + $0x150] sm:$0xff]
  %v60 = vld [vmem:[%s1 + $0x158] sm:$0xff]
  %v61 = vld [vmem:[%s1 + $0x160] sm:$0xff]
  %v62 = vld [vmem:[%s1 + $0x168] sm:$0xff]
  %v63 = vld [vmem:[%s1 + $0x170] sm:$0xff]
  %v64 = vld [vmem:[%s1 + $0x178] sm:$0xff]
  %v65 = vld [vmem:[%s1 + $0x180] sm:$0xff]
  %v66 = vld [vmem:[%s1 + $0x188] sm:$0xff]
  %v67 = vld [vmem:[%s1 + $0x190] sm:$0xff]
  %v68 = vld [vmem:[%s1 + $0x198] sm:$0xff]
  %v69 = vld [vmem:[%s1 + $0x1a0] sm:$0xff]
  %v70 = vld [vmem:[%s1 + $0x1a8] sm:$0xff]
  %v71 = vld [vmem:[%s1 + $0x1b0] sm:$0xff]
  %v72 = vld [vmem:[%s1 + $0x1b8] sm:$0xff]
  %v73 = vld [vmem:[%s1 + $0x1c0] sm:$0xff]
  %v74 = vld [vmem:[%s1 + $0x1c8] sm:$0xff]
  %v75 = vld [vmem:[%s1 + $0x1d0] sm:$0xff]
  %v76 = vld [vmem:[%s1 + $0x1d8] sm:$0xff]
  %v77 = vld [vmem:[%s1 + $0x1e0] sm:$0xff]
  %v78 = vld [vmem:[%s1 + $0x1e8] sm:$0xff]
  %v79 = vld [vmem:[%s1 + $0x1f0] sm:$0xff]
  %v80 = vld [vmem:[%s1 + $0x1f8] sm:$0xff]
  %v81 = vld [vmem:[#allocation2] sm:$0xff]
  %v82 = vld [vmem:[#allocation3] sm:$0xff]
  %v83 = vld [vmem:[%s0] sm:$0xff]
  %v84 = vld [vmem:[%s0 + $0x8] sm:$0xff]
  %v85 = vld [vmem:[%s0 + $0x10] sm:$0xff]
  %v86 = vld [vmem:[%s0 + $0x18] sm:$0xff]
  %87 = vmatpush.msra.mxu0 %v77
  %88 = vmatpush.msra.mxu0 %v73
  %89 = vmatpush.msra.mxu0 %v69
  %90 = vmatpush.msra.mxu0 %v65
  %91 = vmatpush.msra.mxu0 %v61
  %92 = vmatpush.msra.mxu0 %v57
  %93 = vmatpush.msra.mxu0 %v53
  %94 = vmatpush.msra.mxu0 %v49
  %95 = vmatpush.msra.mxu0 %v45
  %96 = vmatpush.msra.mxu0 %v41
  %97 = vmatpush.msra.mxu0 %v37
  %98 = vmatpush.msra.mxu0 %v33
  %99 = vmatpush.msra.mxu0 %v29
  %100 = vmatpush.msra.mxu0 %v25
  %101 = vmatpush.msra.mxu0 %v21
  %102 = vmatpush.msra.mxu0 %v17
  %103 = vmatmul.f32.gmra.mxu0 %v81
  %v104 = vpop.f32.mrf.mxu0
  %v105 = vadd.f32 0.0, %v104
  %106 = vdwg.mxu0
  %107 = vmatpush.msra.mxu0 %v78
  %108 = vmatpush.msra.mxu0 %v74
  %109 = vmatpush.msra.mxu0 %v70
  %110 = vmatpush.msra.mxu0 %v66
  %111 = vmatpush.msra.mxu0 %v62
  %112 = vmatpush.msra.mxu0 %v58
  %113 = vmatpush.msra.mxu0 %v54
  %114 = vmatpush.msra.mxu0 %v50
  %115 = vmatpush.msra.mxu0 %v46
  %116 = vmatpush.msra.mxu0 %v42
  %117 = vmatpush.msra.mxu0 %v38
  %118 = vmatpush.msra.mxu0 %v34
  %119 = vmatpush.msra.mxu0 %v30
  %120 = vmatpush.msra.mxu0 %v26
  %121 = vmatpush.msra.mxu0 %v22
  %122 = vmatpush.msra.mxu0 %v18
  %123 = vmatmul.f32.gmra.mxu0 %v81
  %v124 = vpop.f32.mrf.mxu0
  %v125 = vadd.f32 0.0, %v124
  %126 = vdwg.mxu0
  %127 = vmatpush.msra.mxu0 %v79
  %128 = vmatpush.msra.mxu0 %v75
  %129 = vmatpush.msra.mxu0 %v71
  %130 = vmatpush.msra.mxu0 %v67
  %131 = vmatpush.msra.mxu0 %v63
  %132 = vmatpush.msra.mxu0 %v59
  %133 = vmatpush.msra.mxu0 %v55
  %134 = vmatpush.msra.mxu0 %v51
  %135 = vmatpush.msra.mxu0 %v47
  %136 = vmatpush.msra.mxu0 %v43
  %137 = vmatpush.msra.mxu0 %v39
  %138 = vmatpush.msra.mxu0 %v35
  %139 = vmatpush.msra.mxu0 %v31
  %140 = vmatpush.msra.mxu0 %v27
  %141 = vmatpush.msra.mxu0 %v23
  %142 = vmatpush.msra.mxu0 %v19
  %143 = vmatmul.f32.gmra.mxu0 %v81
  %v144 = vpop.f32.mrf.mxu0
  %v145 = vadd.f32 0.0, %v144
  %146 = vdwg.mxu0
  %147 = vmatpush.msra.mxu0 %v80
  %148 = vmatpush.msra.mxu0 %v76
  %149 = vmatpush.msra.mxu0 %v72
  %150 = vmatpush.msra.mxu0 %v68
  %151 = vmatpush.msra.mxu0 %v64
  %152 = vmatpush.msra.mxu0 %v60
  %153 = vmatpush.msra.mxu0 %v56
  %154 = vmatpush.msra.mxu0 %v52
  %155 = vmatpush.msra.mxu0 %v48
  %156 = vmatpush.msra.mxu0 %v44
  %157 = vmatpush.msra.mxu0 %v40
  %158 = vmatpush.msra.mxu0 %v36
  %159 = vmatpush.msra.mxu0 %v32
  %160 = vmatpush.msra.mxu0 %v28
  %161 = vmatpush.msra.mxu0 %v24
  %162 = vmatpush.msra.mxu0 %v20
  %163 = vmatmul.f32.gmra.mxu0 %v81
  %v164 = vpop.f32.mrf.mxu0
  %v165 = vadd.f32 0.0, %v164
  %166 = vdwg.mxu0
  %v167 = vadd.f32 %v83, %v105
  %v168 = vadd.f32 %v84, %v125
  %v169 = vadd.f32 %v85, %v145
  %v170 = vadd.f32 %v86, %v165
  %v171 = vxor.u32 %v167, 2147483648
  %v172 = vmul.f32 %v171, 1.442695
  %v173 = vpow.pop %v172
  %v174 = vadd.f32 %v173, 1.0
  %v175 = vrcp.pop %v174
  %v176 = vmul.f32 %v174, %v175
  %v177 = vsub.f32 1.0, %v176
  %v178 = vmul.f32 %v175, %v177
  %v179 = vadd.f32 %v175, %v178
  %vm180 = vweird.f32 %v174
  %vm181 = vweird.f32 %v175
  %vm182 = vmor %vm180, %vm181
  %v183 = vsel %vm182, %v175, %v179
  %v184 = vand.u32 2147483647, %v174
  %vm185 = vcmp.eq.f32.partialorder %v184, 8.507059e+37
  %v186 = vand.u32 %v174, 2147483648
  %v187 = vor.u32 1.1754944e-38, %v186
  %v188 = vsel %vm185, %v187, %v183
  %v189 = vmul.f32 1.0, %v188
  %v190 = vxor.u32 %v168, 2147483648
  %v191 = vmul.f32 %v190, 1.442695
  %v192 = vpow.pop %v191
  %v193 = vadd.f32 %v192, 1.0
  %v194 = vrcp.pop %v193
  %v195 = vmul.f32 %v193, %v194
  %v196 = vsub.f32 1.0, %v195
  %v197 = vmul.f32 %v194, %v196
  %v198 = vadd.f32 %v194, %v197
  %vm199 = vweird.f32 %v193
  %vm200 = vweird.f32 %v194
  %vm201 = vmor %vm199, %vm200
  %v202 = vsel %vm201, %v194, %v198
  %v203 = vand.u32 2147483647, %v193
  %vm204 = vcmp.eq.f32.partialorder %v203, 8.507059e+37
  %v205 = vand.u32 %v193, 2147483648
  %v206 = vor.u32 1.1754944e-38, %v205
  %v207 = vsel %vm204, %v206, %v202
  %v208 = vmul.f32 1.0, %v207
  %v209 = vtanh.pop %v169
  %v210 = vxor.u32 %v170, 2147483648
  %v211 = vmul.f32 %v210, 1.442695
  %v212 = vpow.pop %v211
  %v213 = vadd.f32 %v212, 1.0
  %v214 = vrcp.pop %v213
  %v215 = vmul.f32 %v213, %v214
  %v216 = vsub.f32 1.0, %v215
  %v217 = vmul.f32 %v214, %v216
  %v218 = vadd.f32 %v214, %v217
  %vm219 = vweird.f32 %v213
  %vm220 = vweird.f32 %v214
  %vm221 = vmor %vm219, %vm220
  %v222 = vsel %vm221, %v214, %v218
  %v223 = vand.u32 2147483647, %v213
  %vm224 = vcmp.eq.f32.partialorder %v223, 8.507059e+37
  %v225 = vand.u32 %v213, 2147483648
  %v226 = vor.u32 1.1754944e-38, %v225
  %v227 = vsel %vm224, %v226, %v222
  %v228 = vmul.f32 1.0, %v227
  %v229 = vmul.f32 %v208, %v82
  %v230 = vmul.f32 %v189, %v209
  %v231 = vadd.f32 %v229, %v230
  %v232 = vtanh.pop %v231
  %v233 = vmul.f32 %v228, %v232
  %234 = vst [vmem:[%s2] sm:$0xff] %v233
  %s235 = scalar_lea.vmem %s0, 32
  %v236 = vld [vmem:[%s235] sm:$0xff]
  %v237 = vld [vmem:[%s235 + $0x8] sm:$0xff]
  %v238 = vld [vmem:[%s235 + $0x10] sm:$0xff]
  %v239 = vld [vmem:[%s235 + $0x18] sm:$0xff]
  %240 = vmatpush.msra.mxu0 %v77
  %241 = vmatpush.msra.mxu0 %v73
  %242 = vmatpush.msra.mxu0 %v69
  %243 = vmatpush.msra.mxu0 %v65
  %244 = vmatpush.msra.mxu0 %v61
  %245 = vmatpush.msra.mxu0 %v57
  %246 = vmatpush.msra.mxu0 %v53
  %247 = vmatpush.msra.mxu0 %v49
  %248 = vmatpush.msra.mxu0 %v45
  %249 = vmatpush.msra.mxu0 %v41
  %250 = vmatpush.msra.mxu0 %v37
  %251 = vmatpush.msra.mxu0 %v33
  %252 = vmatpush.msra.mxu0 %v29
  %253 = vmatpush.msra.mxu0 %v25
  %254 = vmatpush.msra.mxu0 %v21
  %255 = vmatpush.msra.mxu0 %v17
  %256 = vmatmul.f32.gmra.mxu0 %v233
  %v257 = vpop.f32.mrf.mxu0
  %v258 = vadd.f32 0.0, %v257
  %259 = vdwg.mxu0
  %260 = vmatpush.msra.mxu0 %v78
  %261 = vmatpush.msra.mxu0 %v74
  %262 = vmatpush.msra.mxu0 %v70
  %263 = vmatpush.msra.mxu0 %v66
  %264 = vmatpush.msra.mxu0 %v62
  %265 = vmatpush.msra.mxu0 %v58
  %266 = vmatpush.msra.mxu0 %v54
  %267 = vmatpush.msra.mxu0 %v50
  %268 = vmatpush.msra.mxu0 %v46
  %269 = vmatpush.msra.mxu0 %v42
  %270 = vmatpush.msra.mxu0 %v38
  %271 = vmatpush.msra.mxu0 %v34
  %272 = vmatpush.msra.mxu0 %v30
  %273 = vmatpush.msra.mxu0 %v26
  %274 = vmatpush.msra.mxu0 %v22
  %275 = vmatpush.msra.mxu0 %v18
  %276 = vmatmul.f32.gmra.mxu0 %v233
  %v277 = vpop.f32.mrf.mxu0
  %v278 = vadd.f32 0.0, %v277
  %279 = vdwg.mxu0
  %280 = vmatpush.msra.mxu0 %v79
  %281 = vmatpush.msra.mxu0 %v75
  %282 = vmatpush.msra.mxu0 %v71
  %283 = vmatpush.msra.mxu0 %v67
  %284 = vmatpush.msra.mxu0 %v63
  %285 = vmatpush.msra.mxu0 %v59
  %286 = vmatpush.msra.mxu0 %v55
  %287 = vmatpush.msra.mxu0 %v51
  %288 = vmatpush.msra.mxu0 %v47
  %289 = vmatpush.msra.mxu0 %v43
  %290 = vmatpush.msra.mxu0 %v39
  %291 = vmatpush.msra.mxu0 %v35
  %292 = vmatpush.msra.mxu0 %v31
  %293 = vmatpush.msra.mxu0 %v27
  %294 = vmatpush.msra.mxu0 %v23
  %295 = vmatpush.msra.mxu0 %v19
  %296 = vmatmul.f32.gmra.mxu0 %v233
  %v297 = vpop.f32.mrf.mxu0
  %v298 = vadd.f32 0.0, %v297
  %299 = vdwg.mxu0
  %300 = vmatpush.msra.mxu0 %v80
  %301 = vmatpush.msra.mxu0 %v76
  %302 = vmatpush.msra.mxu0 %v72
  %303 = vmatpush.msra.mxu0 %v68
  %304 = vmatpush.msra.mxu0 %v64
  %305 = vmatpush.msra.mxu0 %v60
  %306 = vmatpush.msra.mxu0 %v56
  %307 = vmatpush.msra.mxu0 %v52
  %308 = vmatpush.msra.mxu0 %v48
  %309 = vmatpush.msra.mxu0 %v44
  %310 = vmatpush.msra.mxu0 %v40
  %311 = vmatpush.msra.mxu0 %v36
  %312 = vmatpush.msra.mxu0 %v32
  %313 = vmatpush.msra.mxu0 %v28
  %314 = vmatpush.msra.mxu0 %v24
  %315 = vmatpush.msra.mxu0 %v20
  %316 = vmatmul.f32.gmra.mxu0 %v233
  %v317 = vpop.f32.mrf.mxu0
  %v318 = vadd.f32 0.0, %v317
  %319 = vdwg.mxu0
  %v320 = vadd.f32 %v236, %v258
  %v321 = vadd.f32 %v237, %v278
  %v322 = vadd.f32 %v238, %v298
  %v323 = vadd.f32 %v239, %v318
  %v324 = vxor.u32 %v320, 2147483648
  %v325 = vmul.f32 %v324, 1.442695
  %v326 = vpow.pop %v325
  %v327 = vadd.f32 %v326, 1.0
  %v328 = vrcp.pop %v327
  %v329 = vmul.f32 %v327, %v328
  %v330 = vsub.f32 1.0, %v329
  %v331 = vmul.f32 %v328, %v330
  %v332 = vadd.f32 %v328, %v331
  %vm333 = vweird.f32 %v327
  %vm334 = vweird.f32 %v328
  %vm335 = vmor %vm333, %vm334
  %v336 = vsel %vm335, %v328, %v332
  %v337 = vand.u32 2147483647, %v327
  %vm338 = vcmp.eq.f32.partialorder %v337, 8.507059e+37
  %v339 = vand.u32 %v327, 2147483648
  %v340 = vor.u32 1.1754944e-38, %v339
  %v341 = vsel %vm338, %v340, %v336
  %v342 = vmul.f32 1.0, %v341
  %v343 = vxor.u32 %v321, 2147483648
  %v344 = vmul.f32 %v343, 1.442695
  %v345 = vpow.pop %v344
  %v346 = vadd.f32 %v345, 1.0
  %v347 = vrcp.pop %v346
  %v348 = vmul.f32 %v346, %v347
  %v349 = vsub.f32 1.0, %v348
  %v350 = vmul.f32 %v347, %v349
  %v351 = vadd.f32 %v347, %v350
  %vm352 = vweird.f32 %v346
  %vm353 = vweird.f32 %v347
  %vm354 = vmor %vm352, %vm353
  %v355 = vsel %vm354, %v347, %v351
  %v356 = vand.u32 2147483647, %v346
  %vm357 = vcmp.eq.f32.partialorder %v356, 8.507059e+37
  %v358 = vand.u32 %v346, 2147483648
  %v359 = vor.u32 1.1754944e-38, %v358
  %v360 = vsel %vm357, %v359, %v355
  %v361 = vmul.f32 1.0, %v360
  %v362 = vtanh.pop %v322
  %v363 = vxor.u32 %v323, 2147483648
  %v364 = vmul.f32 %v363, 1.442695
  %v365 = vpow.pop %v364
  %v366 = vadd.f32 %v365, 1.0
  %v367 = vrcp.pop %v366
  %v368 = vmul.f32 %v366, %v367
  %v369 = vsub.f32 1.0, %v368
  %v370 = vmul.f32 %v367, %v369
  %v371 = vadd.f32 %v367, %v370
  %vm372 = vweird.f32 %v366
  %vm373 = vweird.f32 %v367
  %vm374 = vmor %vm372, %vm373
  %v375 = vsel %vm374, %v367, %v371
  %v376 = vand.u32 2147483647, %v366
  %vm377 = vcmp.eq.f32.partialorder %v376, 8.507059e+37
  %v378 = vand.u32 %v366, 2147483648
  %v379 = vor.u32 1.1754944e-38, %v378
  %v380 = vsel %vm377, %v379, %v375
  %v381 = vmul.f32 1.0, %v380
  %v382 = vmul.f32 %v361, %v231
  %v383 = vmul.f32 %v342, %v362
  %v384 = vadd.f32 %v382, %v383
  %v385 = vtanh.pop %v384
  %v386 = vmul.f32 %v381, %v385
  %s387 = scalar_lea.vmem %s2, 8
  %388 = vst [vmem:[%s387] sm:$0xff] %v386
  %s389 = scalar_lea.vmem %s0, 64
  %v390 = vld [vmem:[%s389] sm:$0xff]
  %v391 = vld [vmem:[%s389 + $0x8] sm:$0xff]
  %v392 = vld [vmem:[%s389 + $0x10] sm:$0xff]
  %v393 = vld [vmem:[%s389 + $0x18] sm:$0xff]
  %394 = vmatpush.msra.mxu0 %v77
  %395 = vmatpush.msra.mxu0 %v73
  %396 = vmatpush.msra.mxu0 %v69
  %397 = vmatpush.msra.mxu0 %v65
  %398 = vmatpush.msra.mxu0 %v61
  %399 = vmatpush.msra.mxu0 %v57
  %400 = vmatpush.msra.mxu0 %v53
  %401 = vmatpush.msra.mxu0 %v49
  %402 = vmatpush.msra.mxu0 %v45
  %403 = vmatpush.msra.mxu0 %v41
  %404 = vmatpush.msra.mxu0 %v37
  %405 = vmatpush.msra.mxu0 %v33
  %406 = vmatpush.msra.mxu0 %v29
  %407 = vmatpush.msra.mxu0 %v25
  %408 = vmatpush.msra.mxu0 %v21
  %409 = vmatpush.msra.mxu0 %v17
  %410 = vmatmul.f32.gmra.mxu0 %v386
  %v411 = vpop.f32.mrf.mxu0
  %v412 = vadd.f32 0.0, %v411
  %413 = vdwg.mxu0
  %414 = vmatpush.msra.mxu0 %v78
  %415 = vmatpush.msra.mxu0 %v74
  %416 = vmatpush.msra.mxu0 %v70
  %417 = vmatpush.msra.mxu0 %v66
  %418 = vmatpush.msra.mxu0 %v62
  %419 = vmatpush.msra.mxu0 %v58
  %420 = vmatpush.msra.mxu0 %v54
  %421 = vmatpush.msra.mxu0 %v50
  %422 = vmatpush.msra.mxu0 %v46
  %423 = vmatpush.msra.mxu0 %v42
  %424 = vmatpush.msra.mxu0 %v38
  %425 = vmatpush.msra.mxu0 %v34
  %426 = vmatpush.msra.mxu0 %v30
  %427 = vmatpush.msra.mxu0 %v26
  %428 = vmatpush.msra.mxu0 %v22
  %429 = vmatpush.msra.mxu0 %v18
  %430 = vmatmul.f32.gmra.mxu0 %v386
  %v431 = vpop.f32.mrf.mxu0
  %v432 = vadd.f32 0.0, %v431
  %433 = vdwg.mxu0
  %434 = vmatpush.msra.mxu0 %v79
  %435 = vmatpush.msra.mxu0 %v75
  %436 = vmatpush.msra.mxu0 %v71
  %437 = vmatpush.msra.mxu0 %v67
  %438 = vmatpush.msra.mxu0 %v63
  %439 = vmatpush.msra.mxu0 %v59
  %440 = vmatpush.msra.mxu0 %v55
  %441 = vmatpush.msra.mxu0 %v51
  %442 = vmatpush.msra.mxu0 %v47
  %443 = vmatpush.msra.mxu0 %v43
  %444 = vmatpush.msra.mxu0 %v39
  %445 = vmatpush.msra.mxu0 %v35
  %446 = vmatpush.msra.mxu0 %v31
  %447 = vmatpush.msra.mxu0 %v27
  %448 = vmatpush.msra.mxu0 %v23
  %449 = vmatpush.msra.mxu0 %v19
  %450 = vmatmul.f32.gmra.mxu0 %v386
  %v451 = vpop.f32.mrf.mxu0
  %v452 = vadd.f32 0.0, %v451
  %453 = vdwg.mxu0
  %454 = vmatpush.msra.mxu0 %v80
  %455 = vmatpush.msra.mxu0 %v76
  %456 = vmatpush.msra.mxu0 %v72
  %457 = vmatpush.msra.mxu0 %v68
  %458 = vmatpush.msra.mxu0 %v64
  %459 = vmatpush.msra.mxu0 %v60
  %460 = vmatpush.msra.mxu0 %v56
  %461 = vmatpush.msra.mxu0 %v52
  %462 = vmatpush.msra.mxu0 %v48
  %463 = vmatpush.msra.mxu0 %v44
  %464 = vmatpush.msra.mxu0 %v40
  %465 = vmatpush.msra.mxu0 %v36
  %466 = vmatpush.msra.mxu0 %v32
  %467 = vmatpush.msra.mxu0 %v28
  %468 = vmatpush.msra.mxu0 %v24
  %469 = vmatpush.msra.mxu0 %v20
  %470 = vmatmul.f32.gmra.mxu0 %v386
  %v471 = vpop.f32.mrf.mxu0
  %v472 = vadd.f32 0.0, %v471
  %473 = vdwg.mxu0
  %v474 = vadd.f32 %v390, %v412
  %v475 = vadd.f32 %v391, %v432
  %v476 = vadd.f32 %v392, %v452
  %v477 = vadd.f32 %v393, %v472
  %v478 = vxor.u32 %v474, 2147483648
  %v479 = vmul.f32 %v478, 1.442695
  %v480 = vpow.pop %v479
  %v481 = vadd.f32 %v480, 1.0
  %v482 = vrcp.pop %v481
  %v483 = vmul.f32 %v481, %v482
  %v484 = vsub.f32 1.0, %v483
  %v485 = vmul.f32 %v482, %v484
  %v486 = vadd.f32 %v482, %v485
  %vm487 = vweird.f32 %v481
  %vm488 = vweird.f32 %v482
  %vm489 = vmor %vm487, %vm488
  %v490 = vsel %vm489, %v482, %v486
  %v491 = vand.u32 2147483647, %v481
  %vm492 = vcmp.eq.f32.partialorder %v491, 8.507059e+37
  %v493 = vand.u32 %v481, 2147483648
  %v494 = vor.u32 1.1754944e-38, %v493
  %v495 = vsel %vm492, %v494, %v490
  %v496 = vmul.f32 1.0, %v495
  %v497 = vxor.u32 %v475, 2147483648
  %v498 = vmul.f32 %v497, 1.442695
  %v499 = vpow.pop %v498
  %v500 = vadd.f32 %v499, 1.0
  %v501 = vrcp.pop %v500
  %v502 = vmul.f32 %v500, %v501
  %v503 = vsub.f32 1.0, %v502
  %v504 = vmul.f32 %v501, %v503
  %v505 = vadd.f32 %v501, %v504
  %vm506 = vweird.f32 %v500
  %vm507 = vweird.f32 %v501
  %vm508 = vmor %vm506, %vm507
  %v509 = vsel %vm508, %v501, %v505
  %v510 = vand.u32 2147483647, %v500
  %vm511 = vcmp.eq.f32.partialorder %v510, 8.507059e+37
  %v512 = vand.u32 %v500, 2147483648
  %v513 = vor.u32 1.1754944e-38, %v512
  %v514 = vsel %vm511, %v513, %v509
  %v515 = vmul.f32 1.0, %v514
  %v516 = vtanh.pop %v476
  %v517 = vxor.u32 %v477, 2147483648
  %v518 = vmul.f32 %v517, 1.442695
  %v519 = vpow.pop %v518
  %v520 = vadd.f32 %v519, 1.0
  %v521 = vrcp.pop %v520
  %v522 = vmul.f32 %v520, %v521
  %v523 = vsub.f32 1.0, %v522
  %v524 = vmul.f32 %v521, %v523
  %v525 = vadd.f32 %v521, %v524
  %vm526 = vweird.f32 %v520
  %vm527 = vweird.f32 %v521
  %vm528 = vmor %vm526, %vm527
  %v529 = vsel %vm528, %v521, %v525
  %v530 = vand.u32 2147483647, %v520
  %vm531 = vcmp.eq.f32.partialorder %v530, 8.507059e+37
  %v532 = vand.u32 %v520, 2147483648
  %v533 = vor.u32 1.1754944e-38, %v532
  %v534 = vsel %vm531, %v533, %v529
  %v535 = vmul.f32 1.0, %v534
  %v536 = vmul.f32 %v515, %v384
  %v537 = vmul.f32 %v496, %v516
  %v538 = vadd.f32 %v536, %v537
  %v539 = vtanh.pop %v538
  %v540 = vmul.f32 %v535, %v539
  %s541 = scalar_lea.vmem %s2, 16
  %542 = vst [vmem:[%s541] sm:$0xff] %v540
  %s543 = scalar_lea.vmem %s0, 96
  %v544 = vld [vmem:[%s543] sm:$0xff]
  %v545 = vld [vmem:[%s543 + $0x8] sm:$0xff]
  %v546 = vld [vmem:[%s543 + $0x10] sm:$0xff]
  %v547 = vld [vmem:[%s543 + $0x18] sm:$0xff]
  %548 = vmatpush.msra.mxu0 %v77
  %549 = vmatpush.msra.mxu0 %v73
  %550 = vmatpush.msra.mxu0 %v69
  %551 = vmatpush.msra.mxu0 %v65
  %552 = vmatpush.msra.mxu0 %v61
  %553 = vmatpush.msra.mxu0 %v57
  %554 = vmatpush.msra.mxu0 %v53
  %555 = vmatpush.msra.mxu0 %v49
  %556 = vmatpush.msra.mxu0 %v45
  %557 = vmatpush.msra.mxu0 %v41
  %558 = vmatpush.msra.mxu0 %v37
  %559 = vmatpush.msra.mxu0 %v33
  %560 = vmatpush.msra.mxu0 %v29
  %561 = vmatpush.msra.mxu0 %v25
  %562 = vmatpush.msra.mxu0 %v21
  %563 = vmatpush.msra.mxu0 %v17
  %564 = vmatmul.f32.gmra.mxu0 %v540
  %v565 = vpop.f32.mrf.mxu0
  %v566 = vadd.f32 0.0, %v565
  %567 = vdwg.mxu0
  %568 = vmatpush.msra.mxu0 %v78
  %569 = vmatpush.msra.mxu0 %v74
  %570 = vmatpush.msra.mxu0 %v70
  %571 = vmatpush.msra.mxu0 %v66
  %572 = vmatpush.msra.mxu0 %v62
  %573 = vmatpush.msra.mxu0 %v58
  %574 = vmatpush.msra.mxu0 %v54
  %575 = vmatpush.msra.mxu0 %v50
  %576 = vmatpush.msra.mxu0 %v46
  %577 = vmatpush.msra.mxu0 %v42
  %578 = vmatpush.msra.mxu0 %v38
  %579 = vmatpush.msra.mxu0 %v34
  %580 = vmatpush.msra.mxu0 %v30
  %581 = vmatpush.msra.mxu0 %v26
  %582 = vmatpush.msra.mxu0 %v22
  %583 = vmatpush.msra.mxu0 %v18
  %584 = vmatmul.f32.gmra.mxu0 %v540
  %v585 = vpop.f32.mrf.mxu0
  %v586 = vadd.f32 0.0, %v585
  %587 = vdwg.mxu0
  %588 = vmatpush.msra.mxu0 %v79
  %589 = vmatpush.msra.mxu0 %v75
  %590 = vmatpush.msra.mxu0 %v71
  %591 = vmatpush.msra.mxu0 %v67
  %592 = vmatpush.msra.mxu0 %v63
  %593 = vmatpush.msra.mxu0 %v59
  %594 = vmatpush.msra.mxu0 %v55
  %595 = vmatpush.msra.mxu0 %v51
  %596 = vmatpush.msra.mxu0 %v47
  %597 = vmatpush.msra.mxu0 %v43
  %598 = vmatpush.msra.mxu0 %v39
  %599 = vmatpush.msra.mxu0 %v35
  %600 = vmatpush.msra.mxu0 %v31
  %601 = vmatpush.msra.mxu0 %v27
  %602 = vmatpush.msra.mxu0 %v23
  %603 = vmatpush.msra.mxu0 %v19
  %604 = vmatmul.f32.gmra.mxu0 %v540
  %v605 = vpop.f32.mrf.mxu0
  %v606 = vadd.f32 0.0, %v605
  %607 = vdwg.mxu0
  %608 = vmatpush.msra.mxu0 %v80
  %609 = vmatpush.msra.mxu0 %v76
  %610 = vmatpush.msra.mxu0 %v72
  %611 = vmatpush.msra.mxu0 %v68
  %612 = vmatpush.msra.mxu0 %v64
  %613 = vmatpush.msra.mxu0 %v60
  %614 = vmatpush.msra.mxu0 %v56
  %615 = vmatpush.msra.mxu0 %v52
  %616 = vmatpush.msra.mxu0 %v48
  %617 = vmatpush.msra.mxu0 %v44
  %618 = vmatpush.msra.mxu0 %v40
  %619 = vmatpush.msra.mxu0 %v36
  %620 = vmatpush.msra.mxu0 %v32
  %621 = vmatpush.msra.mxu0 %v28
  %622 = vmatpush.msra.mxu0 %v24
  %623 = vmatpush.msra.mxu0 %v20
  %624 = vmatmul.f32.gmra.mxu0 %v540
  %v625 = vpop.f32.mrf.mxu0
  %v626 = vadd.f32 0.0, %v625
  %627 = vdwg.mxu0
  %v628 = vadd.f32 %v544, %v566
  %v629 = vadd.f32 %v545, %v586
  %v630 = vadd.f32 %v546, %v606
  %v631 = vadd.f32 %v547, %v626
  %v632 = vxor.u32 %v628, 2147483648
  %v633 = vmul.f32 %v632, 1.442695
  %v634 = vpow.pop %v633
  %v635 = vadd.f32 %v634, 1.0
  %v636 = vrcp.pop %v635
  %v637 = vmul.f32 %v635, %v636
  %v638 = vsub.f32 1.0, %v637
  %v639 = vmul.f32 %v636, %v638
  %v640 = vadd.f32 %v636, %v639
  %vm641 = vweird.f32 %v635
  %vm642 = vweird.f32 %v636
  %vm643 = vmor %vm641, %vm642
  %v644 = vsel %vm643, %v636, %v640
  %v645 = vand.u32 2147483647, %v635
  %vm646 = vcmp.eq.f32.partialorder %v645, 8.507059e+37
  %v647 = vand.u32 %v635, 2147483648
  %v648 = vor.u32 1.1754944e-38, %v647
  %v649 = vsel %vm646, %v648, %v644
  %v650 = vmul.f32 1.0, %v649
  %v651 = vxor.u32 %v629, 2147483648
  %v652 = vmul.f32 %v651, 1.442695
  %v653 = vpow.pop %v652
  %v654 = vadd.f32 %v653, 1.0
  %v655 = vrcp.pop %v654
  %v656 = vmul.f32 %v654, %v655
  %v657 = vsub.f32 1.0, %v656
  %v658 = vmul.f32 %v655, %v657
  %v659 = vadd.f32 %v655, %v658
  %vm660 = vweird.f32 %v654
  %vm661 = vweird.f32 %v655
  %vm662 = vmor %vm660, %vm661
  %v663 = vsel %vm662, %v655, %v659
  %v664 = vand.u32 2147483647, %v654
  %vm665 = vcmp.eq.f32.partialorder %v664, 8.507059e+37
  %v666 = vand.u32 %v654, 2147483648
  %v667 = vor.u32 1.1754944e-38, %v666
  %v668 = vsel %vm665, %v667, %v663
  %v669 = vmul.f32 1.0, %v668
  %v670 = vtanh.pop %v630
  %v671 = vxor.u32 %v631, 2147483648
  %v672 = vmul.f32 %v671, 1.442695
  %v673 = vpow.pop %v672
  %v674 = vadd.f32 %v673, 1.0
  %v675 = vrcp.pop %v674
  %v676 = vmul.f32 %v674, %v675
  %v677 = vsub.f32 1.0, %v676
  %v678 = vmul.f32 %v675, %v677
  %v679 = vadd.f32 %v675, %v678
  %vm680 = vweird.f32 %v674
  %vm681 = vweird.f32 %v675
  %vm682 = vmor %vm680, %vm681
  %v683 = vsel %vm682, %v675, %v679
  %v684 = vand.u32 2147483647, %v674
  %vm685 = vcmp.eq.f32.partialorder %v684, 8.507059e+37
  %v686 = vand.u32 %v674, 2147483648
  %v687 = vor.u32 1.1754944e-38, %v686
  %v688 = vsel %vm685, %v687, %v683
  %v689 = vmul.f32 1.0, %v688
  %v690 = vmul.f32 %v669, %v538
  %v691 = vmul.f32 %v650, %v670
  %v692 = vadd.f32 %v690, %v691
  %v693 = vtanh.pop %v692
  %v694 = vmul.f32 %v689, %v693
  %s695 = scalar_lea.vmem %s2, 24
  %696 = vst [vmem:[%s695] sm:$0xff] %v694
  %s697 = scalar_lea.vmem %s0, 128
  %v698 = vld [vmem:[%s697] sm:$0xff]
  %v699 = vld [vmem:[%s697 + $0x8] sm:$0xff]
  %v700 = vld [vmem:[%s697 + $0x10] sm:$0xff]
  %v701 = vld [vmem:[%s697 + $0x18] sm:$0xff]
  %702 = vmatpush.msra.mxu0 %v77
  %703 = vmatpush.msra.mxu0 %v73
  %704 = vmatpush.msra.mxu0 %v69
  %705 = vmatpush.msra.mxu0 %v65
  %706 = vmatpush.msra.mxu0 %v61
  %707 = vmatpush.msra.mxu0 %v57
  %708 = vmatpush.msra.mxu0 %v53
  %709 = vmatpush.msra.mxu0 %v49
  %710 = vmatpush.msra.mxu0 %v45
  %711 = vmatpush.msra.mxu0 %v41
  %712 = vmatpush.msra.mxu0 %v37
  %713 = vmatpush.msra.mxu0 %v33
  %714 = vmatpush.msra.mxu0 %v29
  %715 = vmatpush.msra.mxu0 %v25
  %716 = vmatpush.msra.mxu0 %v21
  %717 = vmatpush.msra.mxu0 %v17
  %718 = vmatmul.f32.gmra.mxu0 %v694
  %v719 = vpop.f32.mrf.mxu0
  %v720 = vadd.f32 0.0, %v719
  %721 = vdwg.mxu0
  %722 = vmatpush.msra.mxu0 %v78
  %723 = vmatpush.msra.mxu0 %v74
  %724 = vmatpush.msra.mxu0 %v70
  %725 = vmatpush.msra.mxu0 %v66
  %726 = vmatpush.msra.mxu0 %v62
  %727 = vmatpush.msra.mxu0 %v58
  %728 = vmatpush.msra.mxu0 %v54
  %729 = vmatpush.msra.mxu0 %v50
  %730 = vmatpush.msra.mxu0 %v46
  %731 = vmatpush.msra.mxu0 %v42
  %732 = vmatpush.msra.mxu0 %v38
  %733 = vmatpush.msra.mxu0 %v34
  %734 = vmatpush.msra.mxu0 %v30
  %735 = vmatpush.msra.mxu0 %v26
  %736 = vmatpush.msra.mxu0 %v22
  %737 = vmatpush.msra.mxu0 %v18
  %738 = vmatmul.f32.gmra.mxu0 %v694
  %v739 = vpop.f32.mrf.mxu0
  %v740 = vadd.f32 0.0, %v739
  %741 = vdwg.mxu0
  %742 = vmatpush.msra.mxu0 %v79
  %743 = vmatpush.msra.mxu0 %v75
  %744 = vmatpush.msra.mxu0 %v71
  %745 = vmatpush.msra.mxu0 %v67
  %746 = vmatpush.msra.mxu0 %v63
  %747 = vmatpush.msra.mxu0 %v59
  %748 = vmatpush.msra.mxu0 %v55
  %749 = vmatpush.msra.mxu0 %v51
  %750 = vmatpush.msra.mxu0 %v47
  %751 = vmatpush.msra.mxu0 %v43
  %752 = vmatpush.msra.mxu0 %v39
  %753 = vmatpush.msra.mxu0 %v35
  %754 = vmatpush.msra.mxu0 %v31
  %755 = vmatpush.msra.mxu0 %v27
  %756 = vmatpush.msra.mxu0 %v23
  %757 = vmatpush.msra.mxu0 %v19
  %758 = vmatmul.f32.gmra.mxu0 %v694
  %v759 = vpop.f32.mrf.mxu0
  %v760 = vadd.f32 0.0, %v759
  %761 = vdwg.mxu0
  %762 = vmatpush.msra.mxu0 %v80
  %763 = vmatpush.msra.mxu0 %v76
  %764 = vmatpush.msra.mxu0 %v72
  %765 = vmatpush.msra.mxu0 %v68
  %766 = vmatpush.msra.mxu0 %v64
  %767 = vmatpush.msra.mxu0 %v60
  %768 = vmatpush.msra.mxu0 %v56
  %769 = vmatpush.msra.mxu0 %v52
  %770 = vmatpush.msra.mxu0 %v48
  %771 = vmatpush.msra.mxu0 %v44
  %772 = vmatpush.msra.mxu0 %v40
  %773 = vmatpush.msra.mxu0 %v36
  %774 = vmatpush.msra.mxu0 %v32
  %775 = vmatpush.msra.mxu0 %v28
  %776 = vmatpush.msra.mxu0 %v24
  %777 = vmatpush.msra.mxu0 %v20
  %778 = vmatmul.f32.gmra.mxu0 %v694
  %v779 = vpop.f32.mrf.mxu0
  %v780 = vadd.f32 0.0, %v779
  %781 = vdwg.mxu0
  %v782 = vadd.f32 %v698, %v720
  %v783 = vadd.f32 %v699, %v740
  %v784 = vadd.f32 %v700, %v760
  %v785 = vadd.f32 %v701, %v780
  %v786 = vxor.u32 %v782, 2147483648
  %v787 = vmul.f32 %v786, 1.442695
  %v788 = vpow.pop %v787
  %v789 = vadd.f32 %v788, 1.0
  %v790 = vrcp.pop %v789
  %v791 = vmul.f32 %v789, %v790
  %v792 = vsub.f32 1.0, %v791
  %v793 = vmul.f32 %v790, %v792
  %v794 = vadd.f32 %v790, %v793
  %vm795 = vweird.f32 %v789
  %vm796 = vweird.f32 %v790
  %vm797 = vmor %vm795, %vm796
  %v798 = vsel %vm797, %v790, %v794
  %v799 = vand.u32 2147483647, %v789
  %vm800 = vcmp.eq.f32.partialorder %v799, 8.507059e+37
  %v801 = vand.u32 %v789, 2147483648
  %v802 = vor.u32 1.1754944e-38, %v801
  %v803 = vsel %vm800, %v802, %v798
  %v804 = vmul.f32 1.0, %v803
  %v805 = vxor.u32 %v783, 2147483648
  %v806 = vmul.f32 %v805, 1.442695
  %v807 = vpow.pop %v806
  %v808 = vadd.f32 %v807, 1.0
  %v809 = vrcp.pop %v808
  %v810 = vmul.f32 %v808, %v809
  %v811 = vsub.f32 1.0, %v810
  %v812 = vmul.f32 %v809, %v811
  %v813 = vadd.f32 %v809, %v812
  %vm814 = vweird.f32 %v808
  %vm815 = vweird.f32 %v809
  %vm816 = vmor %vm814, %vm815
  %v817 = vsel %vm816, %v809, %v813
  %v818 = vand.u32 2147483647, %v808
  %vm819 = vcmp.eq.f32.partialorder %v818, 8.507059e+37
  %v820 = vand.u32 %v808, 2147483648
  %v821 = vor.u32 1.1754944e-38, %v820
  %v822 = vsel %vm819, %v821, %v817
  %v823 = vmul.f32 1.0, %v822
  %v824 = vtanh.pop %v784
  %v825 = vxor.u32 %v785, 2147483648
  %v826 = vmul.f32 %v825, 1.442695
  %v827 = vpow.pop %v826
  %v828 = vadd.f32 %v827, 1.0
  %v829 = vrcp.pop %v828
  %v830 = vmul.f32 %v828, %v829
  %v831 = vsub.f32 1.0, %v830
  %v832 = vmul.f32 %v829, %v831
  %v833 = vadd.f32 %v829, %v832
  %vm834 = vweird.f32 %v828
  %vm835 = vweird.f32 %v829
  %vm836 = vmor %vm834, %vm835
  %v837 = vsel %vm836, %v829, %v833
  %v838 = vand.u32 2147483647, %v828
  %vm839 = vcmp.eq.f32.partialorder %v838, 8.507059e+37
  %v840 = vand.u32 %v828, 2147483648
  %v841 = vor.u32 1.1754944e-38, %v840
  %v842 = vsel %vm839, %v841, %v837
  %v843 = vmul.f32 1.0, %v842
  %v844 = vmul.f32 %v823, %v692
  %v845 = vmul.f32 %v804, %v824
  %v846 = vadd.f32 %v844, %v845
  %v847 = vtanh.pop %v846
  %v848 = vmul.f32 %v843, %v847
  %s849 = scalar_lea.vmem %s2, 32
  %850 = vst [vmem:[%s849] sm:$0xff] %v848
  %s851 = scalar_lea.vmem %s0, 160
  %v852 = vld [vmem:[%s851] sm:$0xff]
  %v853 = vld [vmem:[%s851 + $0x8] sm:$0xff]
  %v854 = vld [vmem:[%s851 + $0x10] sm:$0xff]
  %v855 = vld [vmem:[%s851 + $0x18] sm:$0xff]
  %856 = vmatpush.msra.mxu0 %v77
  %857 = vmatpush.msra.mxu0 %v73
  %858 = vmatpush.msra.mxu0 %v69
  %859 = vmatpush.msra.mxu0 %v65
  %860 = vmatpush.msra.mxu0 %v61
  %861 = vmatpush.msra.mxu0 %v57
  %862 = vmatpush.msra.mxu0 %v53
  %863 = vmatpush.msra.mxu0 %v49
  %864 = vmatpush.msra.mxu0 %v45
  %865 = vmatpush.msra.mxu0 %v41
  %866 = vmatpush.msra.mxu0 %v37
  %867 = vmatpush.msra.mxu0 %v33
  %868 = vmatpush.msra.mxu0 %v29
  %869 = vmatpush.msra.mxu0 %v25
  %870 = vmatpush.msra.mxu0 %v21
  %871 = vmatpush.msra.mxu0 %v17
  %872 = vmatmul.f32.gmra.mxu0 %v848
  %v873 = vpop.f32.mrf.mxu0
  %v874 = vadd.f32 0.0, %v873
  %875 = vdwg.mxu0
  %876 = vmatpush.msra.mxu0 %v78
  %877 = vmatpush.msra.mxu0 %v74
  %878 = vmatpush.msra.mxu0 %v70
  %879 = vmatpush.msra.mxu0 %v66
  %880 = vmatpush.msra.mxu0 %v62
  %881 = vmatpush.msra.mxu0 %v58
  %882 = vmatpush.msra.mxu0 %v54
  %883 = vmatpush.msra.mxu0 %v50
  %884 = vmatpush.msra.mxu0 %v46
  %885 = vmatpush.msra.mxu0 %v42
  %886 = vmatpush.msra.mxu0 %v38
  %887 = vmatpush.msra.mxu0 %v34
  %888 = vmatpush.msra.mxu0 %v30
  %889 = vmatpush.msra.mxu0 %v26
  %890 = vmatpush.msra.mxu0 %v22
  %891 = vmatpush.msra.mxu0 %v18
  %892 = vmatmul.f32.gmra.mxu0 %v848
  %v893 = vpop.f32.mrf.mxu0
  %v894 = vadd.f32 0.0, %v893
  %895 = vdwg.mxu0
  %896 = vmatpush.msra.mxu0 %v79
  %897 = vmatpush.msra.mxu0 %v75
  %898 = vmatpush.msra.mxu0 %v71
  %899 = vmatpush.msra.mxu0 %v67
  %900 = vmatpush.msra.mxu0 %v63
  %901 = vmatpush.msra.mxu0 %v59
  %902 = vmatpush.msra.mxu0 %v55
  %903 = vmatpush.msra.mxu0 %v51
  %904 = vmatpush.msra.mxu0 %v47
  %905 = vmatpush.msra.mxu0 %v43
  %906 = vmatpush.msra.mxu0 %v39
  %907 = vmatpush.msra.mxu0 %v35
  %908 = vmatpush.msra.mxu0 %v31
  %909 = vmatpush.msra.mxu0 %v27
  %910 = vmatpush.msra.mxu0 %v23
  %911 = vmatpush.msra.mxu0 %v19
  %912 = vmatmul.f32.gmra.mxu0 %v848
  %v913 = vpop.f32.mrf.mxu0
  %v914 = vadd.f32 0.0, %v913
  %915 = vdwg.mxu0
  %916 = vmatpush.msra.mxu0 %v80
  %917 = vmatpush.msra.mxu0 %v76
  %918 = vmatpush.msra.mxu0 %v72
  %919 = vmatpush.msra.mxu0 %v68
  %920 = vmatpush.msra.mxu0 %v64
  %921 = vmatpush.msra.mxu0 %v60
  %922 = vmatpush.msra.mxu0 %v56
  %923 = vmatpush.msra.mxu0 %v52
  %924 = vmatpush.msra.mxu0 %v48
  %925 = vmatpush.msra.mxu0 %v44
  %926 = vmatpush.msra.mxu0 %v40
  %927 = vmatpush.msra.mxu0 %v36
  %928 = vmatpush.msra.mxu0 %v32
  %929 = vmatpush.msra.mxu0 %v28
  %930 = vmatpush.msra.mxu0 %v24
  %931 = vmatpush.msra.mxu0 %v20
  %932 = vmatmul.f32.gmra.mxu0 %v848
  %v933 = vpop.f32.mrf.mxu0
  %v934 = vadd.f32 0.0, %v933
  %935 = vdwg.mxu0
  %v936 = vadd.f32 %v852, %v874
  %v937 = vadd.f32 %v853, %v894
  %v938 = vadd.f32 %v854, %v914
  %v939 = vadd.f32 %v855, %v934
  %v940 = vxor.u32 %v936, 2147483648
  %v941 = vmul.f32 %v940, 1.442695
  %v942 = vpow.pop %v941
  %v943 = vadd.f32 %v942, 1.0
  %v944 = vrcp.pop %v943
  %v945 = vmul.f32 %v943, %v944
  %v946 = vsub.f32 1.0, %v945
  %v947 = vmul.f32 %v944, %v946
  %v948 = vadd.f32 %v944, %v947
  %vm949 = vweird.f32 %v943
  %vm950 = vweird.f32 %v944
  %vm951 = vmor %vm949, %vm950
  %v952 = vsel %vm951, %v944, %v948
  %v953 = vand.u32 2147483647, %v943
  %vm954 = vcmp.eq.f32.partialorder %v953, 8.507059e+37
  %v955 = vand.u32 %v943, 2147483648
  %v956 = vor.u32 1.1754944e-38, %v955
  %v957 = vsel %vm954, %v956, %v952
  %v958 = vmul.f32 1.0, %v957
  %v959 = vxor.u32 %v937, 2147483648
  %v960 = vmul.f32 %v959, 1.442695
  %v961 = vpow.pop %v960
  %v962 = vadd.f32 %v961, 1.0
  %v963 = vrcp.pop %v962
  %v964 = vmul.f32 %v962, %v963
  %v965 = vsub.f32 1.0, %v964
  %v966 = vmul.f32 %v963, %v965
  %v967 = vadd.f32 %v963, %v966
  %vm968 = vweird.f32 %v962
  %vm969 = vweird.f32 %v963
  %vm970 = vmor %vm968, %vm969
  %v971 = vsel %vm970, %v963, %v967
  %v972 = vand.u32 2147483647, %v962
  %vm973 = vcmp.eq.f32.partialorder %v972, 8.507059e+37
  %v974 = vand.u32 %v962, 2147483648
  %v975 = vor.u32 1.1754944e-38, %v974
  %v976 = vsel %vm973, %v975, %v971
  %v977 = vmul.f32 1.0, %v976
  %v978 = vtanh.pop %v938
  %v979 = vxor.u32 %v939, 2147483648
  %v980 = vmul.f32 %v979, 1.442695
  %v981 = vpow.pop %v980
  %v982 = vadd.f32 %v981, 1.0
  %v983 = vrcp.pop %v982
  %v984 = vmul.f32 %v982, %v983
  %v985 = vsub.f32 1.0, %v984
  %v986 = vmul.f32 %v983, %v985
  %v987 = vadd.f32 %v983, %v986
  %vm988 = vweird.f32 %v982
  %vm989 = vweird.f32 %v983
  %vm990 = vmor %vm988, %vm989
  %v991 = vsel %vm990, %v983, %v987
  %v992 = vand.u32 2147483647, %v982
  %vm993 = vcmp.eq.f32.partialorder %v992, 8.507059e+37
  %v994 = vand.u32 %v982, 2147483648
  %v995 = vor.u32 1.1754944e-38, %v994
  %v996 = vsel %vm993, %v995, %v991
  %v997 = vmul.f32 1.0, %v996
  %v998 = vmul.f32 %v977, %v846
  %v999 = vmul.f32 %v958, %v978
  %v1000 = vadd.f32 %v998, %v999
  %v1001 = vtanh.pop %v1000
  %v1002 = vmul.f32 %v997, %v1001
  %s1003 = scalar_lea.vmem %s2, 40
  %1004 = vst [vmem:[%s1003] sm:$0xff] %v1002
  %s1005 = scalar_lea.vmem %s0, 192
  %v1006 = vld [vmem:[%s1005] sm:$0xff]
  %v1007 = vld [vmem:[%s1005 + $0x8] sm:$0xff]
  %v1008 = vld [vmem:[%s1005 + $0x10] sm:$0xff]
  %v1009 = vld [vmem:[%s1005 + $0x18] sm:$0xff]
  %1010 = vmatpush.msra.mxu0 %v77
  %1011 = vmatpush.msra.mxu0 %v73
  %1012 = vmatpush.msra.mxu0 %v69
  %1013 = vmatpush.msra.mxu0 %v65
  %1014 = vmatpush.msra.mxu0 %v61
  %1015 = vmatpush.msra.mxu0 %v57
  %1016 = vmatpush.msra.mxu0 %v53
  %1017 = vmatpush.msra.mxu0 %v49
  %1018 = vmatpush.msra.mxu0 %v45
  %1019 = vmatpush.msra.mxu0 %v41
  %1020 = vmatpush.msra.mxu0 %v37
  %1021 = vmatpush.msra.mxu0 %v33
  %1022 = vmatpush.msra.mxu0 %v29
  %1023 = vmatpush.msra.mxu0 %v25
  %1024 = vmatpush.msra.mxu0 %v21
  %1025 = vmatpush.msra.mxu0 %v17
  %1026 = vmatmul.f32.gmra.mxu0 %v1002
  %v1027 = vpop.f32.mrf.mxu0
  %v1028 = vadd.f32 0.0, %v1027
  %1029 = vdwg.mxu0
  %1030 = vmatpush.msra.mxu0 %v78
  %1031 = vmatpush.msra.mxu0 %v74
  %1032 = vmatpush.msra.mxu0 %v70
  %1033 = vmatpush.msra.mxu0 %v66
  %1034 = vmatpush.msra.mxu0 %v62
  %1035 = vmatpush.msra.mxu0 %v58
  %1036 = vmatpush.msra.mxu0 %v54
  %1037 = vmatpush.msra.mxu0 %v50
  %1038 = vmatpush.msra.mxu0 %v46
  %1039 = vmatpush.msra.mxu0 %v42
  %1040 = vmatpush.msra.mxu0 %v38
  %1041 = vmatpush.msra.mxu0 %v34
  %1042 = vmatpush.msra.mxu0 %v30
  %1043 = vmatpush.msra.mxu0 %v26
  %1044 = vmatpush.msra.mxu0 %v22
  %1045 = vmatpush.msra.mxu0 %v18
  %1046 = vmatmul.f32.gmra.mxu0 %v1002
  %v1047 = vpop.f32.mrf.mxu0
  %v1048 = vadd.f32 0.0, %v1047
  %1049 = vdwg.mxu0
  %1050 = vmatpush.msra.mxu0 %v79
  %1051 = vmatpush.msra.mxu0 %v75
  %1052 = vmatpush.msra.mxu0 %v71
  %1053 = vmatpush.msra.mxu0 %v67
  %1054 = vmatpush.msra.mxu0 %v63
  %1055 = vmatpush.msra.mxu0 %v59
  %1056 = vmatpush.msra.mxu0 %v55
  %1057 = vmatpush.msra.mxu0 %v51
  %1058 = vmatpush.msra.mxu0 %v47
  %1059 = vmatpush.msra.mxu0 %v43
  %1060 = vmatpush.msra.mxu0 %v39
  %1061 = vmatpush.msra.mxu0 %v35
  %1062 = vmatpush.msra.mxu0 %v31
  %1063 = vmatpush.msra.mxu0 %v27
  %1064 = vmatpush.msra.mxu0 %v23
  %1065 = vmatpush.msra.mxu0 %v19
  %1066 = vmatmul.f32.gmra.mxu0 %v1002
  %v1067 = vpop.f32.mrf.mxu0
  %v1068 = vadd.f32 0.0, %v1067
  %1069 = vdwg.mxu0
  %1070 = vmatpush.msra.mxu0 %v80
  %1071 = vmatpush.msra.mxu0 %v76
  %1072 = vmatpush.msra.mxu0 %v72
  %1073 = vmatpush.msra.mxu0 %v68
  %1074 = vmatpush.msra.mxu0 %v64
  %1075 = vmatpush.msra.mxu0 %v60
  %1076 = vmatpush.msra.mxu0 %v56
  %1077 = vmatpush.msra.mxu0 %v52
  %1078 = vmatpush.msra.mxu0 %v48
  %1079 = vmatpush.msra.mxu0 %v44
  %1080 = vmatpush.msra.mxu0 %v40
  %1081 = vmatpush.msra.mxu0 %v36
  %1082 = vmatpush.msra.mxu0 %v32
  %1083 = vmatpush.msra.mxu0 %v28
  %1084 = vmatpush.msra.mxu0 %v24
  %1085 = vmatpush.msra.mxu0 %v20
  %1086 = vmatmul.f32.gmra.mxu0 %v1002
  %v1087 = vpop.f32.mrf.mxu0
  %v1088 = vadd.f32 0.0, %v1087
  %1089 = vdwg.mxu0
  %v1090 = vadd.f32 %v1006, %v1028
  %v1091 = vadd.f32 %v1007, %v1048
  %v1092 = vadd.f32 %v1008, %v1068
  %v1093 = vadd.f32 %v1009, %v1088
  %v1094 = vxor.u32 %v1090, 2147483648
  %v1095 = vmul.f32 %v1094, 1.442695
  %v1096 = vpow.pop %v1095
  %v1097 = vadd.f32 %v1096, 1.0
  %v1098 = vrcp.pop %v1097
  %v1099 = vmul.f32 %v1097, %v1098
  %v1100 = vsub.f32 1.0, %v1099
  %v1101 = vmul.f32 %v1098, %v1100
  %v1102 = vadd.f32 %v1098, %v1101
  %vm1103 = vweird.f32 %v1097
  %vm1104 = vweird.f32 %v1098
  %vm1105 = vmor %vm1103, %vm1104
  %v1106 = vsel %vm1105, %v1098, %v1102
  %v1107 = vand.u32 2147483647, %v1097
  %vm1108 = vcmp.eq.f32.partialorder %v1107, 8.507059e+37
  %v1109 = vand.u32 %v1097, 2147483648
  %v1110 = vor.u32 1.1754944e-38, %v1109
  %v1111 = vsel %vm1108, %v1110, %v1106
  %v1112 = vmul.f32 1.0, %v1111
  %v1113 = vxor.u32 %v1091, 2147483648
  %v1114 = vmul.f32 %v1113, 1.442695
  %v1115 = vpow.pop %v1114
  %v1116 = vadd.f32 %v1115, 1.0
  %v1117 = vrcp.pop %v1116
  %v1118 = vmul.f32 %v1116, %v1117
  %v1119 = vsub.f32 1.0, %v1118
  %v1120 = vmul.f32 %v1117, %v1119
  %v1121 = vadd.f32 %v1117, %v1120
  %vm1122 = vweird.f32 %v1116
  %vm1123 = vweird.f32 %v1117
  %vm1124 = vmor %vm1122, %vm1123
  %v1125 = vsel %vm1124, %v1117, %v1121
  %v1126 = vand.u32 2147483647, %v1116
  %vm1127 = vcmp.eq.f32.partialorder %v1126, 8.507059e+37
  %v1128 = vand.u32 %v1116, 2147483648
  %v1129 = vor.u32 1.1754944e-38, %v1128
  %v1130 = vsel %vm1127, %v1129, %v1125
  %v1131 = vmul.f32 1.0, %v1130
  %v1132 = vtanh.pop %v1092
  %v1133 = vxor.u32 %v1093, 2147483648
  %v1134 = vmul.f32 %v1133, 1.442695
  %v1135 = vpow.pop %v1134
  %v1136 = vadd.f32 %v1135, 1.0
  %v1137 = vrcp.pop %v1136
  %v1138 = vmul.f32 %v1136, %v1137
  %v1139 = vsub.f32 1.0, %v1138
  %v1140 = vmul.f32 %v1137, %v1139
  %v1141 = vadd.f32 %v1137, %v1140
  %vm1142 = vweird.f32 %v1136
  %vm1143 = vweird.f32 %v1137
  %vm1144 = vmor %vm1142, %vm1143
  %v1145 = vsel %vm1144, %v1137, %v1141
  %v1146 = vand.u32 2147483647, %v1136
  %vm1147 = vcmp.eq.f32.partialorder %v1146, 8.507059e+37
  %v1148 = vand.u32 %v1136, 2147483648
  %v1149 = vor.u32 1.1754944e-38, %v1148
  %v1150 = vsel %vm1147, %v1149, %v1145
  %v1151 = vmul.f32 1.0, %v1150
  %v1152 = vmul.f32 %v1131, %v1000
  %v1153 = vmul.f32 %v1112, %v1132
  %v1154 = vadd.f32 %v1152, %v1153
  %v1155 = vtanh.pop %v1154
  %v1156 = vmul.f32 %v1151, %v1155
  %s1157 = scalar_lea.vmem %s2, 48
  %1158 = vst [vmem:[%s1157] sm:$0xff] %v1156
  %s1159 = scalar_lea.vmem %s0, 224
  %v1160 = vld [vmem:[%s1159] sm:$0xff]
  %v1161 = vld [vmem:[%s1159 + $0x8] sm:$0xff]
  %v1162 = vld [vmem:[%s1159 + $0x10] sm:$0xff]
  %v1163 = vld [vmem:[%s1159 + $0x18] sm:$0xff]
  %1164 = vmatpush.msra.mxu0 %v77
  %1165 = vmatpush.msra.mxu0 %v73
  %1166 = vmatpush.msra.mxu0 %v69
  %1167 = vmatpush.msra.mxu0 %v65
  %1168 = vmatpush.msra.mxu0 %v61
  %1169 = vmatpush.msra.mxu0 %v57
  %1170 = vmatpush.msra.mxu0 %v53
  %1171 = vmatpush.msra.mxu0 %v49
  %1172 = vmatpush.msra.mxu0 %v45
  %1173 = vmatpush.msra.mxu0 %v41
  %1174 = vmatpush.msra.mxu0 %v37
  %1175 = vmatpush.msra.mxu0 %v33
  %1176 = vmatpush.msra.mxu0 %v29
  %1177 = vmatpush.msra.mxu0 %v25
  %1178 = vmatpush.msra.mxu0 %v21
  %1179 = vmatpush.msra.mxu0 %v17
  %1180 = vmatmul.f32.gmra.mxu0 %v1156
  %v1181 = vpop.f32.mrf.mxu0
  %v1182 = vadd.f32 0.0, %v1181
  %1183 = vdwg.mxu0
  %1184 = vmatpush.msra.mxu0 %v78
  %1185 = vmatpush.msra.mxu0 %v74
  %1186 = vmatpush.msra.mxu0 %v70
  %1187 = vmatpush.msra.mxu0 %v66
  %1188 = vmatpush.msra.mxu0 %v62
  %1189 = vmatpush.msra.mxu0 %v58
  %1190 = vmatpush.msra.mxu0 %v54
  %1191 = vmatpush.msra.mxu0 %v50
  %1192 = vmatpush.msra.mxu0 %v46
  %1193 = vmatpush.msra.mxu0 %v42
  %1194 = vmatpush.msra.mxu0 %v38
  %1195 = vmatpush.msra.mxu0 %v34
  %1196 = vmatpush.msra.mxu0 %v30
  %1197 = vmatpush.msra.mxu0 %v26
  %1198 = vmatpush.msra.mxu0 %v22
  %1199 = vmatpush.msra.mxu0 %v18
  %1200 = vmatmul.f32.gmra.mxu0 %v1156
  %v1201 = vpop.f32.mrf.mxu0
  %v1202 = vadd.f32 0.0, %v1201
  %1203 = vdwg.mxu0
  %1204 = vmatpush.msra.mxu0 %v79
  %1205 = vmatpush.msra.mxu0 %v75
  %1206 = vmatpush.msra.mxu0 %v71
  %1207 = vmatpush.msra.mxu0 %v67
  %1208 = vmatpush.msra.mxu0 %v63
  %1209 = vmatpush.msra.mxu0 %v59
  %1210 = vmatpush.msra.mxu0 %v55
  %1211 = vmatpush.msra.mxu0 %v51
  %1212 = vmatpush.msra.mxu0 %v47
  %1213 = vmatpush.msra.mxu0 %v43
  %1214 = vmatpush.msra.mxu0 %v39
  %1215 = vmatpush.msra.mxu0 %v35
  %1216 = vmatpush.msra.mxu0 %v31
  %1217 = vmatpush.msra.mxu0 %v27
  %1218 = vmatpush.msra.mxu0 %v23
  %1219 = vmatpush.msra.mxu0 %v19
  %1220 = vmatmul.f32.gmra.mxu0 %v1156
  %v1221 = vpop.f32.mrf.mxu0
  %v1222 = vadd.f32 0.0, %v1221
  %1223 = vdwg.mxu0
  %1224 = vmatpush.msra.mxu0 %v80
  %1225 = vmatpush.msra.mxu0 %v76
  %1226 = vmatpush.msra.mxu0 %v72
  %1227 = vmatpush.msra.mxu0 %v68
  %1228 = vmatpush.msra.mxu0 %v64
  %1229 = vmatpush.msra.mxu0 %v60
  %1230 = vmatpush.msra.mxu0 %v56
  %1231 = vmatpush.msra.mxu0 %v52
  %1232 = vmatpush.msra.mxu0 %v48
  %1233 = vmatpush.msra.mxu0 %v44
  %1234 = vmatpush.msra.mxu0 %v40
  %1235 = vmatpush.msra.mxu0 %v36
  %1236 = vmatpush.msra.mxu0 %v32
  %1237 = vmatpush.msra.mxu0 %v28
  %1238 = vmatpush.msra.mxu0 %v24
  %1239 = vmatpush.msra.mxu0 %v20
  %1240 = vmatmul.f32.gmra.mxu0 %v1156
  %v1241 = vpop.f32.mrf.mxu0
  %v1242 = vadd.f32 0.0, %v1241
  %1243 = vdwg.mxu0
  %v1244 = vadd.f32 %v1160, %v1182
  %v1245 = vadd.f32 %v1161, %v1202
  %v1246 = vadd.f32 %v1162, %v1222
  %v1247 = vadd.f32 %v1163, %v1242
  %v1248 = vxor.u32 %v1244, 2147483648
  %v1249 = vmul.f32 %v1248, 1.442695
  %v1250 = vpow.pop %v1249
  %v1251 = vadd.f32 %v1250, 1.0
  %v1252 = vrcp.pop %v1251
  %v1253 = vmul.f32 %v1251, %v1252
  %v1254 = vsub.f32 1.0, %v1253
  %v1255 = vmul.f32 %v1252, %v1254
  %v1256 = vadd.f32 %v1252, %v1255
  %vm1257 = vweird.f32 %v1251
  %vm1258 = vweird.f32 %v1252
  %vm1259 = vmor %vm1257, %vm1258
  %v1260 = vsel %vm1259, %v1252, %v1256
  %v1261 = vand.u32 2147483647, %v1251
  %vm1262 = vcmp.eq.f32.partialorder %v1261, 8.507059e+37
  %v1263 = vand.u32 %v1251, 2147483648
  %v1264 = vor.u32 1.1754944e-38, %v1263
  %v1265 = vsel %vm1262, %v1264, %v1260
  %v1266 = vmul.f32 1.0, %v1265
  %v1267 = vxor.u32 %v1245, 2147483648
  %v1268 = vmul.f32 %v1267, 1.442695
  %v1269 = vpow.pop %v1268
  %v1270 = vadd.f32 %v1269, 1.0
  %v1271 = vrcp.pop %v1270
  %v1272 = vmul.f32 %v1270, %v1271
  %v1273 = vsub.f32 1.0, %v1272
  %v1274 = vmul.f32 %v1271, %v1273
  %v1275 = vadd.f32 %v1271, %v1274
  %vm1276 = vweird.f32 %v1270
  %vm1277 = vweird.f32 %v1271
  %vm1278 = vmor %vm1276, %vm1277
  %v1279 = vsel %vm1278, %v1271, %v1275
  %v1280 = vand.u32 2147483647, %v1270
  %vm1281 = vcmp.eq.f32.partialorder %v1280, 8.507059e+37
  %v1282 = vand.u32 %v1270, 2147483648
  %v1283 = vor.u32 1.1754944e-38, %v1282
  %v1284 = vsel %vm1281, %v1283, %v1279
  %v1285 = vmul.f32 1.0, %v1284
  %v1286 = vtanh.pop %v1246
  %v1287 = vxor.u32 %v1247, 2147483648
  %v1288 = vmul.f32 %v1287, 1.442695
  %v1289 = vpow.pop %v1288
  %v1290 = vadd.f32 %v1289, 1.0
  %v1291 = vrcp.pop %v1290
  %v1292 = vmul.f32 %v1290, %v1291
  %v1293 = vsub.f32 1.0, %v1292
  %v1294 = vmul.f32 %v1291, %v1293
  %v1295 = vadd.f32 %v1291, %v1294
  %vm1296 = vweird.f32 %v1290
  %vm1297 = vweird.f32 %v1291
  %vm1298 = vmor %vm1296, %vm1297
  %v1299 = vsel %vm1298, %v1291, %v1295
  %v1300 = vand.u32 2147483647, %v1290
  %vm1301 = vcmp.eq.f32.partialorder %v1300, 8.507059e+37
  %v1302 = vand.u32 %v1290, 2147483648
  %v1303 = vor.u32 1.1754944e-38, %v1302
  %v1304 = vsel %vm1301, %v1303, %v1299
  %v1305 = vmul.f32 1.0, %v1304
  %v1306 = vmul.f32 %v1285, %v1154
  %v1307 = vmul.f32 %v1266, %v1286
  %v1308 = vadd.f32 %v1306, %v1307
  %v1309 = vtanh.pop %v1308
  %v1310 = vmul.f32 %v1305, %v1309
  %s1311 = scalar_lea.vmem %s2, 56
  %1312 = vst [vmem:[%s1311] sm:$0xff] %v1310
  %1313 = vst [vmem:[#allocation2] sm:$0xff] %v1310
  %1314 = vst [vmem:[#allocation3] sm:$0xff] %v1308
  // Predicated region
  $region14: #{name_lstm_forward.1} parent=0 // pred_check
    _
  $region15: #{name_lstm_forward.1} parent=0 // pred_check_branch
    %1316 = sbr.rel (0) target = $region17
  $region16: #{name_lstm_forward.1} parent=0 // pred_region
    _
  $region17: #{name_lstm_forward.1} parent=0 // pred_fallthru
    _
  // Predicated region
  $region18: #{name_lstm_forward.1} parent=0 // pred_check
    _
  $region19: #{name_lstm_forward.1} parent=0 // pred_check_branch
    %1318 = sbr.rel (0) target = $region21
  $region20: #{name_lstm_forward.1} parent=0 // pred_region
    _
  $region21: #{name_lstm_forward.1} parent=0 // pred_fallthru
    _

</llo_original>
